<compile_context>
chip_gen: v7x
topology: tpu7x:2x2x1
jax: 0.10.0
libtpu: 0.0.40
codegen_flags: <defaults>
</compile_context>

<pallas_src>
import jax
import jax.numpy as jnp
from jax.experimental import pallas as pl
from jax.experimental.pallas import tpu as pltpu


def lstm_recurrence_kernel(xg_ref, wh_ref, len_ref, out_ref):
    """xg_ref: (T, Bb, 4H) precomputed x-gates (x@Wih^T + bias), time-major.
       wh_ref: (H, 4H) recurrent weights (possibly bf16).
       len_ref: (Bb, 1) int32 sequence lengths.
       out_ref: (Bb, H) final hidden state."""
    T = xg_ref.shape[0]
    Bb, H = out_ref.shape

    # Hoist loop-invariant loads out of the recurrence.
    wh = wh_ref[...]          # (H, 4H) — resident across all T steps
    lens = len_ref[...]       # (Bb, 1) int32 — loaded once

    def step(t, carry):
        h, c = carry
        # Only the true serial dependency (h @ W_hh) is on the recurrent path.
        gates = xg_ref[t] + jnp.dot(h.astype(wh.dtype), wh,
                                    preferred_element_type=jnp.float32)
        # PyTorch gate order [i, f, g, o]; elementwise math kept in f32.
        i_g = jax.nn.sigmoid(gates[:, 0 * H:1 * H])
        f_g = jax.nn.sigmoid(gates[:, 1 * H:2 * H])
        g_g = jnp.tanh(gates[:, 2 * H:3 * H])
        o_g = jax.nn.sigmoid(gates[:, 3 * H:4 * H])

        c_new = f_g * c + i_g * g_g
        h_new = o_g * jnp.tanh(c_new)

        # Freeze state for finished sequences (pack_padded_sequence h_n semantics).
        mask = t < lens                               # (Bb, 1) bool
        return jnp.where(mask, h_new, h), jnp.where(mask, c_new, c)

    h0 = jnp.zeros((Bb, H), jnp.float32)
    c0 = jnp.zeros((Bb, H), jnp.float32)
    # Unrolled in-kernel recurrence: h/c stay in vregs, no per-step grid overhead.
    h_final, _ = jax.lax.fori_loop(0, T, step, (h0, c0), unroll=True)
    out_ref[...] = h_final.astype(out_ref.dtype)


def unidirectional_lstm_encoder(x_btE, lengths, w_ih, w_hh, b_ih, b_hh,
                                *, block_b=8, matmul_dtype=jnp.bfloat16):
    """x_btE: (B, T, E) float32, lengths: (B,) int. Returns (B, H) = packed h_n."""
    B, T, E = x_btE.shape
    H4 = w_ih.shape[0]
    H = H4 // 4

    if B < block_b:
        block_b = B
    assert B % block_b == 0, "batch must be divisible by block_b"

    # Hoist the non-recurrent input projection off the serial path:
    # one (B*T, E) x (E, 4H) matmul with bias folded in, produced time-major.
    wx = jnp.transpose(w_ih)                              # (E, 4H)
    bias = (b_ih + b_hh).reshape(1, 1, H4)                # (1, 1, 4H)
    xg_tbG = jnp.einsum('bte,eg->tbg', x_btE, wx) + bias  # (T, B, 4H) f32

    # Recurrent weights in bf16 for the MXU (f32 accumulation in-kernel).
    wh = jnp.transpose(w_hh).astype(matmul_dtype)         # (H, 4H)
    len2d = lengths.reshape(B, 1).astype(jnp.int32)       # (B, 1)

    grid = (B // block_b,)                                # independent batch tiles
    return pl.pallas_call(
        lstm_recurrence_kernel,
        out_shape=jax.ShapeDtypeStruct((B, H), x_btE.dtype),
        grid_spec=pltpu.PrefetchScalarGridSpec(
            num_scalar_prefetch=0,
            grid=grid,
            in_specs=[
                pl.BlockSpec((T, block_b, H4), lambda i: (0, i, 0)),  # x-gates slab
                pl.BlockSpec((H, H4), lambda i: (0, 0)),              # W_hh^T (resident)
                pl.BlockSpec((block_b, 1), lambda i: (i, 0)),         # lengths
            ],
            out_specs=pl.BlockSpec((block_b, H), lambda i: (i, 0)),
        ),
        compiler_params=pltpu.CompilerParams(
            # batch tiles are independent -> megacore-parallel on v7x
            dimension_semantics=("parallel",)),
    )(xg_tbG, wh, len2d)


def lstm_encoder_ref(x_btE, lengths, w_ih, w_hh, b_ih, b_hh):
    """Pure-JAX reference (same semantics as PyTorch packed LSTM h_n)."""
    B, T, E = x_btE.shape
    H = w_hh.shape[1]

    def step(carry, inp):
        h, c = carry
        x_t, t = inp
        gates = x_t @ w_ih.T + h @ w_hh.T + b_ih + b_hh
        i = jax.nn.sigmoid(gates[:, 0 * H:1 * H])
        f = jax.nn.sigmoid(gates[:, 1 * H:2 * H])
        g = jnp.tanh(gates[:, 2 * H:3 * H])
        o = jax.nn.sigmoid(gates[:, 3 * H:4 * H])
        c_new = f * c + i * g
        h_new = o * jnp.tanh(c_new)
        mask = (t < lengths)[:, None]
        return (jnp.where(mask, h_new, h), jnp.where(mask, c_new, c)), None

    h0 = jnp.zeros((B, H), x_btE.dtype)
    c0 = jnp.zeros_like(h0)
    (h, _), _ = jax.lax.scan(step, (h0, c0),
                             (jnp.swapaxes(x_btE, 0, 1), jnp.arange(T)))
    return h


if __name__ == "__main__":
    # Small shapes consistent with the module (word_embedding_dim -> E,
    # encoding_lstm_dim -> H); B=16 so the parallel batch-tile grid is exercised.
    B, T, E, H = 16, 8, 128, 128

    key = jax.random.PRNGKey(0)
    kx, kwi, kwh, kbi, kbh = jax.random.split(key, 5)
    scale = 1.0 / jnp.sqrt(H)  # PyTorch LSTM init range uniform(-1/sqrt(H), 1/sqrt(H))

    x = jax.random.normal(kx, (B, T, E), dtype=jnp.float32)
    lengths = jnp.array([8, 5, 3, 8, 1, 7, 2, 6, 4, 8, 6, 1, 3, 5, 7, 2],
                        dtype=jnp.int32)

    w_ih = jax.random.uniform(kwi, (4 * H, E), jnp.float32, -scale, scale)
    w_hh = jax.random.uniform(kwh, (4 * H, H), jnp.float32, -scale, scale)
    b_ih = jax.random.uniform(kbi, (4 * H,), jnp.float32, -scale, scale)
    b_hh = jax.random.uniform(kbh, (4 * H,), jnp.float32, -scale, scale)

    ref = lstm_encoder_ref(x, lengths, w_ih, w_hh, b_ih, b_hh)

    # f32 recurrent-matmul path (tight check)
    out_f32 = unidirectional_lstm_encoder(x, lengths, w_ih, w_hh, b_ih, b_hh,
                                          matmul_dtype=jnp.float32)
    out_f32 = jax.block_until_ready(out_f32)
    assert out_f32.shape == (B, H)
    assert jnp.allclose(out_f32, ref, atol=1e-3, rtol=1e-3), "f32 path mismatch"

    # bf16 recurrent-matmul path (MXU-peak path on v6e/v7x; looser tolerance,
    # rounding compounds over T steps)
    out_bf16 = unidirectional_lstm_encoder(x, lengths, w_ih, w_hh, b_ih, b_hh,
                                           matmul_dtype=jnp.bfloat16)
    out_bf16 = jax.block_until_ready(out_bf16)
    assert out_bf16.shape == (B, H)
    assert jnp.allclose(out_bf16, ref, atol=5e-2, rtol=5e-2), "bf16 path mismatch"

    print("KERNEL_OK")
</pallas_src>

<mosaic_0001>
module attributes {stable_mosaic.version = 11 : i64} {
  func.func @lstm_recurrence_kernel(%arg0: i32, %arg1: memref<8x8x512xf32, #tpu.memory_space<vmem>>, %arg2: memref<128x512xf32, #tpu.memory_space<vmem>>, %arg3: memref<8x1xi32, #tpu.memory_space<vmem>>, %arg4: memref<8x128xf32, #tpu.memory_space<vmem>>) attributes {dimension_semantics = [#tpu.dimension_semantics<parallel>], iteration_bounds = array<i64: 2>, scalar_prefetch = 0 : i64, scratch_operands = 0 : i64, tpu.core_type = #tpu.core_type<tc>, window_params = [{transform_indices = @transform_0, window_bounds = array<i64: 8, 8, 512>}, {pipeline_mode = #tpu.pipeline_mode<synchronous>, transform_indices = @transform_1, window_bounds = array<i64: 128, 512>}, {transform_indices = @transform_2, window_bounds = array<i64: 8, 1>}, {transform_indices = @transform_3, window_bounds = array<i64: 8, 128>}]} {
    %c0 = arith.constant 0 : index
    %c0_0 = arith.constant 0 : index
    %0 = vector.load %arg2[%c0, %c0_0] : memref<128x512xf32, #tpu.memory_space<vmem>>, vector<128x512xf32>
    %c0_1 = arith.constant 0 : index
    %c0_2 = arith.constant 0 : index
    %1 = vector.load %arg3[%c0_1, %c0_2] : memref<8x1xi32, #tpu.memory_space<vmem>>, vector<8x1xi32>
    %cst = arith.constant 0.000000e+00 : f32
    %2 = vector.broadcast %cst : f32 to vector<8x128xf32>
    %cst_3 = arith.constant 0.000000e+00 : f32
    %3 = vector.broadcast %cst_3 : f32 to vector<8x128xf32>
    %c0_i32 = arith.constant 0 : i32
    %4 = arith.index_cast %c0_i32 : i32 to index
    %c0_4 = arith.constant 0 : index
    %c0_5 = arith.constant 0 : index
    %5 = vector.load %arg1[%4, %c0_4, %c0_5] : memref<8x8x512xf32, #tpu.memory_space<vmem>>, vector<1x8x512xf32>
    %6 = vector.shape_cast %5 : vector<1x8x512xf32> to vector<8x512xf32>
    %cst_6 = arith.constant dense<0.000000e+00> : vector<8x512xf32>
    %7 = tpu.matmul %2, %0, %cst_6 {dimension_numbers = #tpu.dot_dimension_numbers<[1], [0], [0], [1], [0, 0, 1, 1], [], []>} : vector<8x128xf32>, vector<128x512xf32>, vector<8x512xf32> -> vector<8x512xf32>
    %8 = arith.addf %6, %7 : vector<8x512xf32>
    %9 = vector.extract_strided_slice %8 {offsets = [0, 0], sizes = [8, 128], strides = [1, 1]} : vector<8x512xf32> to vector<8x128xf32>
    %10 = arith.negf %9 : vector<8x128xf32>
    %11 = math.exp %10 : vector<8x128xf32>
    %cst_7 = arith.constant 1.000000e+00 : f32
    %12 = vector.broadcast %cst_7 : f32 to vector<8x128xf32>
    %13 = arith.addf %12, %11 : vector<8x128xf32>
    %14 = arith.divf %12, %13 : vector<8x128xf32>
    %15 = vector.extract_strided_slice %8 {offsets = [0, 128], sizes = [8, 128], strides = [1, 1]} : vector<8x512xf32> to vector<8x128xf32>
    %16 = arith.negf %15 : vector<8x128xf32>
    %17 = math.exp %16 : vector<8x128xf32>
    %cst_8 = arith.constant 1.000000e+00 : f32
    %18 = vector.broadcast %cst_8 : f32 to vector<8x128xf32>
    %19 = arith.addf %18, %17 : vector<8x128xf32>
    %20 = arith.divf %18, %19 : vector<8x128xf32>
    %21 = vector.extract_strided_slice %8 {offsets = [0, 256], sizes = [8, 128], strides = [1, 1]} : vector<8x512xf32> to vector<8x128xf32>
    %22 = math.tanh %21 : vector<8x128xf32>
    %23 = vector.extract_strided_slice %8 {offsets = [0, 384], sizes = [8, 128], strides = [1, 1]} : vector<8x512xf32> to vector<8x128xf32>
    %24 = arith.negf %23 : vector<8x128xf32>
    %25 = math.exp %24 : vector<8x128xf32>
    %cst_9 = arith.constant 1.000000e+00 : f32
    %26 = vector.broadcast %cst_9 : f32 to vector<8x128xf32>
    %27 = arith.addf %26, %25 : vector<8x128xf32>
    %28 = arith.divf %26, %27 : vector<8x128xf32>
    %29 = arith.mulf %20, %3 : vector<8x128xf32>
    %30 = arith.mulf %14, %22 : vector<8x128xf32>
    %31 = arith.addf %29, %30 : vector<8x128xf32>
    %32 = math.tanh %31 : vector<8x128xf32>
    %33 = arith.mulf %28, %32 : vector<8x128xf32>
    %34 = vector.broadcast %c0_i32 : i32 to vector<8x1xi32>
    %35 = arith.cmpi slt, %34, %1 : vector<8x1xi32>
    %36 = vector.shape_cast %35 : vector<8x1xi1> to vector<8x1xi1>
    %37 = vector.broadcast %36 : vector<8x1xi1> to vector<8x128xi1>
    %38 = arith.select %37, %33, %2 : vector<8x128xi1>, vector<8x128xf32>
    %39 = vector.shape_cast %35 : vector<8x1xi1> to vector<8x1xi1>
    %40 = vector.broadcast %39 : vector<8x1xi1> to vector<8x128xi1>
    %41 = arith.select %40, %31, %3 : vector<8x128xi1>, vector<8x128xf32>
    %c1_i32 = arith.constant 1 : i32
    %42 = arith.index_cast %c1_i32 : i32 to index
    %c0_10 = arith.constant 0 : index
    %c0_11 = arith.constant 0 : index
    %43 = vector.load %arg1[%42, %c0_10, %c0_11] : memref<8x8x512xf32, #tpu.memory_space<vmem>>, vector<1x8x512xf32>
    %44 = vector.shape_cast %43 : vector<1x8x512xf32> to vector<8x512xf32>
    %cst_12 = arith.constant dense<0.000000e+00> : vector<8x512xf32>
    %45 = tpu.matmul %38, %0, %cst_12 {dimension_numbers = #tpu.dot_dimension_numbers<[1], [0], [0], [1], [0, 0, 1, 1], [], []>} : vector<8x128xf32>, vector<128x512xf32>, vector<8x512xf32> -> vector<8x512xf32>
    %46 = arith.addf %44, %45 : vector<8x512xf32>
    %47 = vector.extract_strided_slice %46 {offsets = [0, 0], sizes = [8, 128], strides = [1, 1]} : vector<8x512xf32> to vector<8x128xf32>
    %48 = arith.negf %47 : vector<8x128xf32>
    %49 = math.exp %48 : vector<8x128xf32>
    %cst_13 = arith.constant 1.000000e+00 : f32
    %50 = vector.broadcast %cst_13 : f32 to vector<8x128xf32>
    %51 = arith.addf %50, %49 : vector<8x128xf32>
    %52 = arith.divf %50, %51 : vector<8x128xf32>
    %53 = vector.extract_strided_slice %46 {offsets = [0, 128], sizes = [8, 128], strides = [1, 1]} : vector<8x512xf32> to vector<8x128xf32>
    %54 = arith.negf %53 : vector<8x128xf32>
    %55 = math.exp %54 : vector<8x128xf32>
    %cst_14 = arith.constant 1.000000e+00 : f32
    %56 = vector.broadcast %cst_14 : f32 to vector<8x128xf32>
    %57 = arith.addf %56, %55 : vector<8x128xf32>
    %58 = arith.divf %56, %57 : vector<8x128xf32>
    %59 = vector.extract_strided_slice %46 {offsets = [0, 256], sizes = [8, 128], strides = [1, 1]} : vector<8x512xf32> to vector<8x128xf32>
    %60 = math.tanh %59 : vector<8x128xf32>
    %61 = vector.extract_strided_slice %46 {offsets = [0, 384], sizes = [8, 128], strides = [1, 1]} : vector<8x512xf32> to vector<8x128xf32>
    %62 = arith.negf %61 : vector<8x128xf32>
    %63 = math.exp %62 : vector<8x128xf32>
    %cst_15 = arith.constant 1.000000e+00 : f32
    %64 = vector.broadcast %cst_15 : f32 to vector<8x128xf32>
    %65 = arith.addf %64, %63 : vector<8x128xf32>
    %66 = arith.divf %64, %65 : vector<8x128xf32>
    %67 = arith.mulf %58, %41 : vector<8x128xf32>
    %68 = arith.mulf %52, %60 : vector<8x128xf32>
    %69 = arith.addf %67, %68 : vector<8x128xf32>
    %70 = math.tanh %69 : vector<8x128xf32>
    %71 = arith.mulf %66, %70 : vector<8x128xf32>
    %72 = vector.broadcast %c1_i32 : i32 to vector<8x1xi32>
    %73 = arith.cmpi slt, %72, %1 : vector<8x1xi32>
    %74 = vector.shape_cast %73 : vector<8x1xi1> to vector<8x1xi1>
    %75 = vector.broadcast %74 : vector<8x1xi1> to vector<8x128xi1>
    %76 = arith.select %75, %71, %38 : vector<8x128xi1>, vector<8x128xf32>
    %77 = vector.shape_cast %73 : vector<8x1xi1> to vector<8x1xi1>
    %78 = vector.broadcast %77 : vector<8x1xi1> to vector<8x128xi1>
    %79 = arith.select %78, %69, %41 : vector<8x128xi1>, vector<8x128xf32>
    %c2_i32 = arith.constant 2 : i32
    %80 = arith.index_cast %c2_i32 : i32 to index
    %c0_16 = arith.constant 0 : index
    %c0_17 = arith.constant 0 : index
    %81 = vector.load %arg1[%80, %c0_16, %c0_17] : memref<8x8x512xf32, #tpu.memory_space<vmem>>, vector<1x8x512xf32>
    %82 = vector.shape_cast %81 : vector<1x8x512xf32> to vector<8x512xf32>
    %cst_18 = arith.constant dense<0.000000e+00> : vector<8x512xf32>
    %83 = tpu.matmul %76, %0, %cst_18 {dimension_numbers = #tpu.dot_dimension_numbers<[1], [0], [0], [1], [0, 0, 1, 1], [], []>} : vector<8x128xf32>, vector<128x512xf32>, vector<8x512xf32> -> vector<8x512xf32>
    %84 = arith.addf %82, %83 : vector<8x512xf32>
    %85 = vector.extract_strided_slice %84 {offsets = [0, 0], sizes = [8, 128], strides = [1, 1]} : vector<8x512xf32> to vector<8x128xf32>
    %86 = arith.negf %85 : vector<8x128xf32>
    %87 = math.exp %86 : vector<8x128xf32>
    %cst_19 = arith.constant 1.000000e+00 : f32
    %88 = vector.broadcast %cst_19 : f32 to vector<8x128xf32>
    %89 = arith.addf %88, %87 : vector<8x128xf32>
    %90 = arith.divf %88, %89 : vector<8x128xf32>
    %91 = vector.extract_strided_slice %84 {offsets = [0, 128], sizes = [8, 128], strides = [1, 1]} : vector<8x512xf32> to vector<8x128xf32>
    %92 = arith.negf %91 : vector<8x128xf32>
    %93 = math.exp %92 : vector<8x128xf32>
    %cst_20 = arith.constant 1.000000e+00 : f32
    %94 = vector.broadcast %cst_20 : f32 to vector<8x128xf32>
    %95 = arith.addf %94, %93 : vector<8x128xf32>
    %96 = arith.divf %94, %95 : vector<8x128xf32>
    %97 = vector.extract_strided_slice %84 {offsets = [0, 256], sizes = [8, 128], strides = [1, 1]} : vector<8x512xf32> to vector<8x128xf32>
    %98 = math.tanh %97 : vector<8x128xf32>
    %99 = vector.extract_strided_slice %84 {offsets = [0, 384], sizes = [8, 128], strides = [1, 1]} : vector<8x512xf32> to vector<8x128xf32>
    %100 = arith.negf %99 : vector<8x128xf32>
    %101 = math.exp %100 : vector<8x128xf32>
    %cst_21 = arith.constant 1.000000e+00 : f32
    %102 = vector.broadcast %cst_21 : f32 to vector<8x128xf32>
    %103 = arith.addf %102, %101 : vector<8x128xf32>
    %104 = arith.divf %102, %103 : vector<8x128xf32>
    %105 = arith.mulf %96, %79 : vector<8x128xf32>
    %106 = arith.mulf %90, %98 : vector<8x128xf32>
    %107 = arith.addf %105, %106 : vector<8x128xf32>
    %108 = math.tanh %107 : vector<8x128xf32>
    %109 = arith.mulf %104, %108 : vector<8x128xf32>
    %110 = vector.broadcast %c2_i32 : i32 to vector<8x1xi32>
    %111 = arith.cmpi slt, %110, %1 : vector<8x1xi32>
    %112 = vector.shape_cast %111 : vector<8x1xi1> to vector<8x1xi1>
    %113 = vector.broadcast %112 : vector<8x1xi1> to vector<8x128xi1>
    %114 = arith.select %113, %109, %76 : vector<8x128xi1>, vector<8x128xf32>
    %115 = vector.shape_cast %111 : vector<8x1xi1> to vector<8x1xi1>
    %116 = vector.broadcast %115 : vector<8x1xi1> to vector<8x128xi1>
    %117 = arith.select %116, %107, %79 : vector<8x128xi1>, vector<8x128xf32>
    %c3_i32 = arith.constant 3 : i32
    %118 = arith.index_cast %c3_i32 : i32 to index
    %c0_22 = arith.constant 0 : index
    %c0_23 = arith.constant 0 : index
    %119 = vector.load %arg1[%118, %c0_22, %c0_23] : memref<8x8x512xf32, #tpu.memory_space<vmem>>, vector<1x8x512xf32>
    %120 = vector.shape_cast %119 : vector<1x8x512xf32> to vector<8x512xf32>
    %cst_24 = arith.constant dense<0.000000e+00> : vector<8x512xf32>
    %121 = tpu.matmul %114, %0, %cst_24 {dimension_numbers = #tpu.dot_dimension_numbers<[1], [0], [0], [1], [0, 0, 1, 1], [], []>} : vector<8x128xf32>, vector<128x512xf32>, vector<8x512xf32> -> vector<8x512xf32>
    %122 = arith.addf %120, %121 : vector<8x512xf32>
    %123 = vector.extract_strided_slice %122 {offsets = [0, 0], sizes = [8, 128], strides = [1, 1]} : vector<8x512xf32> to vector<8x128xf32>
    %124 = arith.negf %123 : vector<8x128xf32>
    %125 = math.exp %124 : vector<8x128xf32>
    %cst_25 = arith.constant 1.000000e+00 : f32
    %126 = vector.broadcast %cst_25 : f32 to vector<8x128xf32>
    %127 = arith.addf %126, %125 : vector<8x128xf32>
    %128 = arith.divf %126, %127 : vector<8x128xf32>
    %129 = vector.extract_strided_slice %122 {offsets = [0, 128], sizes = [8, 128], strides = [1, 1]} : vector<8x512xf32> to vector<8x128xf32>
    %130 = arith.negf %129 : vector<8x128xf32>
    %131 = math.exp %130 : vector<8x128xf32>
    %cst_26 = arith.constant 1.000000e+00 : f32
    %132 = vector.broadcast %cst_26 : f32 to vector<8x128xf32>
    %133 = arith.addf %132, %131 : vector<8x128xf32>
    %134 = arith.divf %132, %133 : vector<8x128xf32>
    %135 = vector.extract_strided_slice %122 {offsets = [0, 256], sizes = [8, 128], strides = [1, 1]} : vector<8x512xf32> to vector<8x128xf32>
    %136 = math.tanh %135 : vector<8x128xf32>
    %137 = vector.extract_strided_slice %122 {offsets = [0, 384], sizes = [8, 128], strides = [1, 1]} : vector<8x512xf32> to vector<8x128xf32>
    %138 = arith.negf %137 : vector<8x128xf32>
    %139 = math.exp %138 : vector<8x128xf32>
    %cst_27 = arith.constant 1.000000e+00 : f32
    %140 = vector.broadcast %cst_27 : f32 to vector<8x128xf32>
    %141 = arith.addf %140, %139 : vector<8x128xf32>
    %142 = arith.divf %140, %141 : vector<8x128xf32>
    %143 = arith.mulf %134, %117 : vector<8x128xf32>
    %144 = arith.mulf %128, %136 : vector<8x128xf32>
    %145 = arith.addf %143, %144 : vector<8x128xf32>
    %146 = math.tanh %145 : vector<8x128xf32>
    %147 = arith.mulf %142, %146 : vector<8x128xf32>
    %148 = vector.broadcast %c3_i32 : i32 to vector<8x1xi32>
    %149 = arith.cmpi slt, %148, %1 : vector<8x1xi32>
    %150 = vector.shape_cast %149 : vector<8x1xi1> to vector<8x1xi1>
    %151 = vector.broadcast %150 : vector<8x1xi1> to vector<8x128xi1>
    %152 = arith.select %151, %147, %114 : vector<8x128xi1>, vector<8x128xf32>
    %153 = vector.shape_cast %149 : vector<8x1xi1> to vector<8x1xi1>
    %154 = vector.broadcast %153 : vector<8x1xi1> to vector<8x128xi1>
    %155 = arith.select %154, %145, %117 : vector<8x128xi1>, vector<8x128xf32>
    %c4_i32 = arith.constant 4 : i32
    %156 = arith.index_cast %c4_i32 : i32 to index
    %c0_28 = arith.constant 0 : index
    %c0_29 = arith.constant 0 : index
    %157 = vector.load %arg1[%156, %c0_28, %c0_29] : memref<8x8x512xf32, #tpu.memory_space<vmem>>, vector<1x8x512xf32>
    %158 = vector.shape_cast %157 : vector<1x8x512xf32> to vector<8x512xf32>
    %cst_30 = arith.constant dense<0.000000e+00> : vector<8x512xf32>
    %159 = tpu.matmul %152, %0, %cst_30 {dimension_numbers = #tpu.dot_dimension_numbers<[1], [0], [0], [1], [0, 0, 1, 1], [], []>} : vector<8x128xf32>, vector<128x512xf32>, vector<8x512xf32> -> vector<8x512xf32>
    %160 = arith.addf %158, %159 : vector<8x512xf32>
    %161 = vector.extract_strided_slice %160 {offsets = [0, 0], sizes = [8, 128], strides = [1, 1]} : vector<8x512xf32> to vector<8x128xf32>
    %162 = arith.negf %161 : vector<8x128xf32>
    %163 = math.exp %162 : vector<8x128xf32>
    %cst_31 = arith.constant 1.000000e+00 : f32
    %164 = vector.broadcast %cst_31 : f32 to vector<8x128xf32>
    %165 = arith.addf %164, %163 : vector<8x128xf32>
    %166 = arith.divf %164, %165 : vector<8x128xf32>
    %167 = vector.extract_strided_slice %160 {offsets = [0, 128], sizes = [8, 128], strides = [1, 1]} : vector<8x512xf32> to vector<8x128xf32>
    %168 = arith.negf %167 : vector<8x128xf32>
    %169 = math.exp %168 : vector<8x128xf32>
    %cst_32 = arith.constant 1.000000e+00 : f32
    %170 = vector.broadcast %cst_32 : f32 to vector<8x128xf32>
    %171 = arith.addf %170, %169 : vector<8x128xf32>
    %172 = arith.divf %170, %171 : vector<8x128xf32>
    %173 = vector.extract_strided_slice %160 {offsets = [0, 256], sizes = [8, 128], strides = [1, 1]} : vector<8x512xf32> to vector<8x128xf32>
    %174 = math.tanh %173 : vector<8x128xf32>
    %175 = vector.extract_strided_slice %160 {offsets = [0, 384], sizes = [8, 128], strides = [1, 1]} : vector<8x512xf32> to vector<8x128xf32>
    %176 = arith.negf %175 : vector<8x128xf32>
    %177 = math.exp %176 : vector<8x128xf32>
    %cst_33 = arith.constant 1.000000e+00 : f32
    %178 = vector.broadcast %cst_33 : f32 to vector<8x128xf32>
    %179 = arith.addf %178, %177 : vector<8x128xf32>
    %180 = arith.divf %178, %179 : vector<8x128xf32>
    %181 = arith.mulf %172, %155 : vector<8x128xf32>
    %182 = arith.mulf %166, %174 : vector<8x128xf32>
    %183 = arith.addf %181, %182 : vector<8x128xf32>
    %184 = math.tanh %183 : vector<8x128xf32>
    %185 = arith.mulf %180, %184 : vector<8x128xf32>
    %186 = vector.broadcast %c4_i32 : i32 to vector<8x1xi32>
    %187 = arith.cmpi slt, %186, %1 : vector<8x1xi32>
    %188 = vector.shape_cast %187 : vector<8x1xi1> to vector<8x1xi1>
    %189 = vector.broadcast %188 : vector<8x1xi1> to vector<8x128xi1>
    %190 = arith.select %189, %185, %152 : vector<8x128xi1>, vector<8x128xf32>
    %191 = vector.shape_cast %187 : vector<8x1xi1> to vector<8x1xi1>
    %192 = vector.broadcast %191 : vector<8x1xi1> to vector<8x128xi1>
    %193 = arith.select %192, %183, %155 : vector<8x128xi1>, vector<8x128xf32>
    %c5_i32 = arith.constant 5 : i32
    %194 = arith.index_cast %c5_i32 : i32 to index
    %c0_34 = arith.constant 0 : index
    %c0_35 = arith.constant 0 : index
    %195 = vector.load %arg1[%194, %c0_34, %c0_35] : memref<8x8x512xf32, #tpu.memory_space<vmem>>, vector<1x8x512xf32>
    %196 = vector.shape_cast %195 : vector<1x8x512xf32> to vector<8x512xf32>
    %cst_36 = arith.constant dense<0.000000e+00> : vector<8x512xf32>
    %197 = tpu.matmul %190, %0, %cst_36 {dimension_numbers = #tpu.dot_dimension_numbers<[1], [0], [0], [1], [0, 0, 1, 1], [], []>} : vector<8x128xf32>, vector<128x512xf32>, vector<8x512xf32> -> vector<8x512xf32>
    %198 = arith.addf %196, %197 : vector<8x512xf32>
    %199 = vector.extract_strided_slice %198 {offsets = [0, 0], sizes = [8, 128], strides = [1, 1]} : vector<8x512xf32> to vector<8x128xf32>
    %200 = arith.negf %199 : vector<8x128xf32>
    %201 = math.exp %200 : vector<8x128xf32>
    %cst_37 = arith.constant 1.000000e+00 : f32
    %202 = vector.broadcast %cst_37 : f32 to vector<8x128xf32>
    %203 = arith.addf %202, %201 : vector<8x128xf32>
    %204 = arith.divf %202, %203 : vector<8x128xf32>
    %205 = vector.extract_strided_slice %198 {offsets = [0, 128], sizes = [8, 128], strides = [1, 1]} : vector<8x512xf32> to vector<8x128xf32>
    %206 = arith.negf %205 : vector<8x128xf32>
    %207 = math.exp %206 : vector<8x128xf32>
    %cst_38 = arith.constant 1.000000e+00 : f32
    %208 = vector.broadcast %cst_38 : f32 to vector<8x128xf32>
    %209 = arith.addf %208, %207 : vector<8x128xf32>
    %210 = arith.divf %208, %209 : vector<8x128xf32>
    %211 = vector.extract_strided_slice %198 {offsets = [0, 256], sizes = [8, 128], strides = [1, 1]} : vector<8x512xf32> to vector<8x128xf32>
    %212 = math.tanh %211 : vector<8x128xf32>
    %213 = vector.extract_strided_slice %198 {offsets = [0, 384], sizes = [8, 128], strides = [1, 1]} : vector<8x512xf32> to vector<8x128xf32>
    %214 = arith.negf %213 : vector<8x128xf32>
    %215 = math.exp %214 : vector<8x128xf32>
    %cst_39 = arith.constant 1.000000e+00 : f32
    %216 = vector.broadcast %cst_39 : f32 to vector<8x128xf32>
    %217 = arith.addf %216, %215 : vector<8x128xf32>
    %218 = arith.divf %216, %217 : vector<8x128xf32>
    %219 = arith.mulf %210, %193 : vector<8x128xf32>
    %220 = arith.mulf %204, %212 : vector<8x128xf32>
    %221 = arith.addf %219, %220 : vector<8x128xf32>
    %222 = math.tanh %221 : vector<8x128xf32>
    %223 = arith.mulf %218, %222 : vector<8x128xf32>
    %224 = vector.broadcast %c5_i32 : i32 to vector<8x1xi32>
    %225 = arith.cmpi slt, %224, %1 : vector<8x1xi32>
    %226 = vector.shape_cast %225 : vector<8x1xi1> to vector<8x1xi1>
    %227 = vector.broadcast %226 : vector<8x1xi1> to vector<8x128xi1>
    %228 = arith.select %227, %223, %190 : vector<8x128xi1>, vector<8x128xf32>
    %229 = vector.shape_cast %225 : vector<8x1xi1> to vector<8x1xi1>
    %230 = vector.broadcast %229 : vector<8x1xi1> to vector<8x128xi1>
    %231 = arith.select %230, %221, %193 : vector<8x128xi1>, vector<8x128xf32>
    %c6_i32 = arith.constant 6 : i32
    %232 = arith.index_cast %c6_i32 : i32 to index
    %c0_40 = arith.constant 0 : index
    %c0_41 = arith.constant 0 : index
    %233 = vector.load %arg1[%232, %c0_40, %c0_41] : memref<8x8x512xf32, #tpu.memory_space<vmem>>, vector<1x8x512xf32>
    %234 = vector.shape_cast %233 : vector<1x8x512xf32> to vector<8x512xf32>
    %cst_42 = arith.constant dense<0.000000e+00> : vector<8x512xf32>
    %235 = tpu.matmul %228, %0, %cst_42 {dimension_numbers = #tpu.dot_dimension_numbers<[1], [0], [0], [1], [0, 0, 1, 1], [], []>} : vector<8x128xf32>, vector<128x512xf32>, vector<8x512xf32> -> vector<8x512xf32>
    %236 = arith.addf %234, %235 : vector<8x512xf32>
    %237 = vector.extract_strided_slice %236 {offsets = [0, 0], sizes = [8, 128], strides = [1, 1]} : vector<8x512xf32> to vector<8x128xf32>
    %238 = arith.negf %237 : vector<8x128xf32>
    %239 = math.exp %238 : vector<8x128xf32>
    %cst_43 = arith.constant 1.000000e+00 : f32
    %240 = vector.broadcast %cst_43 : f32 to vector<8x128xf32>
    %241 = arith.addf %240, %239 : vector<8x128xf32>
    %242 = arith.divf %240, %241 : vector<8x128xf32>
    %243 = vector.extract_strided_slice %236 {offsets = [0, 128], sizes = [8, 128], strides = [1, 1]} : vector<8x512xf32> to vector<8x128xf32>
    %244 = arith.negf %243 : vector<8x128xf32>
    %245 = math.exp %244 : vector<8x128xf32>
    %cst_44 = arith.constant 1.000000e+00 : f32
    %246 = vector.broadcast %cst_44 : f32 to vector<8x128xf32>
    %247 = arith.addf %246, %245 : vector<8x128xf32>
    %248 = arith.divf %246, %247 : vector<8x128xf32>
    %249 = vector.extract_strided_slice %236 {offsets = [0, 256], sizes = [8, 128], strides = [1, 1]} : vector<8x512xf32> to vector<8x128xf32>
    %250 = math.tanh %249 : vector<8x128xf32>
    %251 = vector.extract_strided_slice %236 {offsets = [0, 384], sizes = [8, 128], strides = [1, 1]} : vector<8x512xf32> to vector<8x128xf32>
    %252 = arith.negf %251 : vector<8x128xf32>
    %253 = math.exp %252 : vector<8x128xf32>
    %cst_45 = arith.constant 1.000000e+00 : f32
    %254 = vector.broadcast %cst_45 : f32 to vector<8x128xf32>
    %255 = arith.addf %254, %253 : vector<8x128xf32>
    %256 = arith.divf %254, %255 : vector<8x128xf32>
    %257 = arith.mulf %248, %231 : vector<8x128xf32>
    %258 = arith.mulf %242, %250 : vector<8x128xf32>
    %259 = arith.addf %257, %258 : vector<8x128xf32>
    %260 = math.tanh %259 : vector<8x128xf32>
    %261 = arith.mulf %256, %260 : vector<8x128xf32>
    %262 = vector.broadcast %c6_i32 : i32 to vector<8x1xi32>
    %263 = arith.cmpi slt, %262, %1 : vector<8x1xi32>
    %264 = vector.shape_cast %263 : vector<8x1xi1> to vector<8x1xi1>
    %265 = vector.broadcast %264 : vector<8x1xi1> to vector<8x128xi1>
    %266 = arith.select %265, %261, %228 : vector<8x128xi1>, vector<8x128xf32>
    %267 = vector.shape_cast %263 : vector<8x1xi1> to vector<8x1xi1>
    %268 = vector.broadcast %267 : vector<8x1xi1> to vector<8x128xi1>
    %269 = arith.select %268, %259, %231 : vector<8x128xi1>, vector<8x128xf32>
    %c7_i32 = arith.constant 7 : i32
    %270 = arith.index_cast %c7_i32 : i32 to index
    %c0_46 = arith.constant 0 : index
    %c0_47 = arith.constant 0 : index
    %271 = vector.load %arg1[%270, %c0_46, %c0_47] : memref<8x8x512xf32, #tpu.memory_space<vmem>>, vector<1x8x512xf32>
    %272 = vector.shape_cast %271 : vector<1x8x512xf32> to vector<8x512xf32>
    %cst_48 = arith.constant dense<0.000000e+00> : vector<8x512xf32>
    %273 = tpu.matmul %266, %0, %cst_48 {dimension_numbers = #tpu.dot_dimension_numbers<[1], [0], [0], [1], [0, 0, 1, 1], [], []>} : vector<8x128xf32>, vector<128x512xf32>, vector<8x512xf32> -> vector<8x512xf32>
    %274 = arith.addf %272, %273 : vector<8x512xf32>
    %275 = vector.extract_strided_slice %274 {offsets = [0, 0], sizes = [8, 128], strides = [1, 1]} : vector<8x512xf32> to vector<8x128xf32>
    %276 = arith.negf %275 : vector<8x128xf32>
    %277 = math.exp %276 : vector<8x128xf32>
    %cst_49 = arith.constant 1.000000e+00 : f32
    %278 = vector.broadcast %cst_49 : f32 to vector<8x128xf32>
    %279 = arith.addf %278, %277 : vector<8x128xf32>
    %280 = arith.divf %278, %279 : vector<8x128xf32>
    %281 = vector.extract_strided_slice %274 {offsets = [0, 128], sizes = [8, 128], strides = [1, 1]} : vector<8x512xf32> to vector<8x128xf32>
    %282 = arith.negf %281 : vector<8x128xf32>
    %283 = math.exp %282 : vector<8x128xf32>
    %cst_50 = arith.constant 1.000000e+00 : f32
    %284 = vector.broadcast %cst_50 : f32 to vector<8x128xf32>
    %285 = arith.addf %284, %283 : vector<8x128xf32>
    %286 = arith.divf %284, %285 : vector<8x128xf32>
    %287 = vector.extract_strided_slice %274 {offsets = [0, 256], sizes = [8, 128], strides = [1, 1]} : vector<8x512xf32> to vector<8x128xf32>
    %288 = math.tanh %287 : vector<8x128xf32>
    %289 = vector.extract_strided_slice %274 {offsets = [0, 384], sizes = [8, 128], strides = [1, 1]} : vector<8x512xf32> to vector<8x128xf32>
    %290 = arith.negf %289 : vector<8x128xf32>
    %291 = math.exp %290 : vector<8x128xf32>
    %cst_51 = arith.constant 1.000000e+00 : f32
    %292 = vector.broadcast %cst_51 : f32 to vector<8x128xf32>
    %293 = arith.addf %292, %291 : vector<8x128xf32>
    %294 = arith.divf %292, %293 : vector<8x128xf32>
    %295 = arith.mulf %286, %269 : vector<8x128xf32>
    %296 = arith.mulf %280, %288 : vector<8x128xf32>
    %297 = arith.addf %295, %296 : vector<8x128xf32>
    %298 = math.tanh %297 : vector<8x128xf32>
    %299 = arith.mulf %294, %298 : vector<8x128xf32>
    %300 = vector.broadcast %c7_i32 : i32 to vector<8x1xi32>
    %301 = arith.cmpi slt, %300, %1 : vector<8x1xi32>
    %302 = vector.shape_cast %301 : vector<8x1xi1> to vector<8x1xi1>
    %303 = vector.broadcast %302 : vector<8x1xi1> to vector<8x128xi1>
    %304 = arith.select %303, %299, %266 : vector<8x128xi1>, vector<8x128xf32>
    %305 = vector.shape_cast %301 : vector<8x1xi1> to vector<8x1xi1>
    %306 = vector.broadcast %305 : vector<8x1xi1> to vector<8x128xi1>
    %307 = arith.select %306, %297, %269 : vector<8x128xi1>, vector<8x128xf32>
    %c8_i32 = arith.constant 8 : i32
    %c0_52 = arith.constant 0 : index
    %c0_53 = arith.constant 0 : index
    %308 = vector.load %arg4[%c0_52, %c0_53] : memref<8x128xf32, #tpu.memory_space<vmem>>, vector<8x128xf32>
    tpu.vector_store %arg4[%c0_52, %c0_53], %304 {strides = array<i32>} : memref<8x128xf32, #tpu.memory_space<vmem>>, vector<8x128xf32>,
    return
  }
  func.func @transform_0(%arg0: i32) -> (i32, i32, i32) {
    %c0_i32 = arith.constant 0 : i32
    %c0_i32_0 = arith.constant 0 : i32
    %c0_i32_1 = arith.constant 0 : i32
    return %c0_i32, %arg0, %c0_i32_0 : i32, i32, i32
  }
  func.func @transform_1(%arg0: i32) -> (i32, i32) {
    %c0_i32 = arith.constant 0 : i32
    %c0_i32_0 = arith.constant 0 : i32
    %c0_i32_1 = arith.constant 0 : i32
    return %c0_i32, %c0_i32_0 : i32, i32
  }
  func.func @transform_2(%arg0: i32) -> (i32, i32) {
    %c0_i32 = arith.constant 0 : i32
    %c0_i32_0 = arith.constant 0 : i32
    return %arg0, %c0_i32 : i32, i32
  }
  func.func @transform_3(%arg0: i32) -> (i32, i32) {
    %c0_i32 = arith.constant 0 : i32
    %c0_i32_0 = arith.constant 0 : i32
    return %arg0, %c0_i32 : i32, i32
  }
}

</mosaic_0001>

<llo_original>
// kernel: tpu_custom_call.1
$region0: #{tpu_custom_call.1}
  #allocation0 [shape = 'u32[]', space=smem, size = 0x4, offset = 0x4, fixed_abs, tag = 'smem constant byte address 0x4 - core index']
  #allocation1 [shape = 'u32[144,128]{1,0:T(1,128)}', space=vmem, size = 0x12000, scoped, tag = 'internal scratch']
  %s0 = inlined_call_operand.hbm [shape: f32[8,16,512], index: 0, kind: input, shape index: {}]
  %s1 = inlined_call_operand.hbm [shape: f32[128,512], index: 1, kind: input, shape index: {}]
  %s2 = inlined_call_operand.vmem [shape: s32[16,1], index: 2, kind: input, shape index: {}]
  %s3 = inlined_call_operand.hbm [shape: f32[16,128], index: 3, kind: output, shape index: {}]
  %s4 = sld [smem:[#allocation0]]
  $region53: #{tpu_custom_call.1} parent=0
    _
  %s6 = ssub.s32 1, %s4
  %s7 = scalar_select 0, %s6, %s4
  $region1: #{tpu_custom_call.1} parent=0
    #allocation2 [shape = 'u8[262144]{0}', space=vmem, size = 0x40000, scoped, tag = 'input window, operand 0']
    #allocation3 [shape = 's32[2]{0}', space=sflag, size = 0x8, scoped, tag = 'scoped memory for tpu_custom_call.1']
    #allocation4 [shape = 's32[2]{0}', space=sflag, size = 0x8, scoped, tag = 'scoped memory for tpu_custom_call.1']
    #allocation5 [shape = 'u8[262144]{0}', space=vmem, size = 0x40000, scoped, tag = 'input window, operand 1, single buffered']
    #allocation6 [shape = 's32[1]{0}', space=sflag, size = 0x4, scoped, tag = 'scoped memory for tpu_custom_call.1']
    #allocation7 [shape = 'u8[8192]{0}', space=vmem, size = 0x2000, scoped, tag = 'output window, operand 0']
    %8 = vsyncpa [#allocation3], 0
    %s9 = scalar_lea.sflag [#allocation3], 1
    %10 = vsyncpa %s9, 0
    %11 = vsyncpa [#allocation6], 0
    %12 = vsyncpa [#allocation4], 0
    %s13 = scalar_lea.sflag [#allocation4], 1
    %14 = vsyncpa %s13, 0
    loop: start=0, step=1, limit=4
    $region2: #{tpu_custom_call.1} parent=1 // loop_pre_header
      _
    $region3: #{tpu_custom_call.1} parent=1 // loop_header
      %s16 = sphi 0, %s20
      %p17 = scmp.ge.s32.totalorder %s16, 4
      %s26 = sphi 0, %s28
      %s29 = sphi 0, %s26
      %s30 = sphi 0, %s29
      %s46 = sphi 0, %s30
      %s50 = sphi 0, %s50
      %s52 = sphi 0, %s50
      %s53 = sphi 0, %s52
      %s67 = sphi 0, %s53
      %s73 = sphi 0, %s75
      %s76 = sphi 0, %s73
      %s77 = sphi 0, %s76
      %s93 = sphi 0, %s77
      %s99 = sphi 0, %s101
      %s102 = sphi 0, %s99
      %s103 = sphi 0, %s102
      %s119 = sphi 0, %s103
    $region4: #{tpu_custom_call.1} parent=1 // loop_header_branch
      %19 = sbr.rel (%p17) target = $region8
    $region5: #{tpu_custom_call.1} parent=1 // loop_body
      %s21 = ssub.s32 %s16, 1
      %s22 = ssub.s32 %s16, 2
      %s23 = sadd.s32 %s16, 1
      %s24 = ssub.s32 %s16, %s23
      %p25 = scmp.eq.s32.totalorder %s24, 0
      %s27 = sadd.s32 %s26, 1
      %s28 = scalar_select %p25, %s26, %s27
      %p31 = pneg %p25
      %p32 = scmp.eq.s32.totalorder %s16, 1
      %p33 = por %p31, %p32
      %p34 = scmp.ne.s32.totalorder %s26, %s29
      %p35 = scmp.eq.s32.totalorder %s16, 0
      %p36 = por %p34, %p35
      %p37 = scmp.ne.s32.totalorder %s26, %s29
      %p38 = scmp.eq.s32.totalorder %s21, 1
      %p39 = por %p37, %p38
      %p40 = scmp.ne.s32.totalorder %s29, %s30
      %p41 = scmp.eq.s32.totalorder %s21, 0
      %p42 = por %p40, %p41
      %p43 = scmp.ne.s32.totalorder %s29, %s30
      %p44 = scmp.eq.s32.totalorder %s22, 1
      %p45 = por %p43, %p44
      %p47 = scmp.ne.s32.totalorder %s30, %s46
      %p48 = scmp.eq.s32.totalorder %s22, 0
      %p49 = por %p47, %p48
      %s51 = sadd.s32 %s50, 1
      %p54 = scmp.eq.s32.totalorder %s16, 1
      %p55 = scmp.ne.s32.totalorder %s50, %s52
      %p56 = scmp.eq.s32.totalorder %s16, 0
      %p57 = por %p55, %p56
      %p58 = scmp.ne.s32.totalorder %s50, %s52
      %p59 = scmp.eq.s32.totalorder %s21, 1
      %p60 = por %p58, %p59
      %p61 = scmp.ne.s32.totalorder %s52, %s53
      %p62 = scmp.eq.s32.totalorder %s21, 0
      %p63 = por %p61, %p62
      %p64 = scmp.ne.s32.totalorder %s52, %s53
      %p65 = scmp.eq.s32.totalorder %s22, 1
      %p66 = por %p64, %p65
      %p68 = scmp.ne.s32.totalorder %s53, %s67
      %p69 = scmp.eq.s32.totalorder %s22, 0
      %p70 = por %p68, %p69
      %s71 = ssub.s32 %s16, %s23
      %p72 = scmp.eq.s32.totalorder %s71, 0
      %s74 = sadd.s32 %s73, 1
      %s75 = scalar_select %p72, %s73, %s74
      %p78 = pneg %p72
      %p79 = scmp.eq.s32.totalorder %s16, 1
      %p80 = por %p78, %p79
      %p81 = scmp.ne.s32.totalorder %s73, %s76
      %p82 = scmp.eq.s32.totalorder %s16, 0
      %p83 = por %p81, %p82
      %p84 = scmp.ne.s32.totalorder %s73, %s76
      %p85 = scmp.eq.s32.totalorder %s21, 1
      %p86 = por %p84, %p85
      %p87 = scmp.ne.s32.totalorder %s76, %s77
      %p88 = scmp.eq.s32.totalorder %s21, 0
      %p89 = por %p87, %p88
      %p90 = scmp.ne.s32.totalorder %s76, %s77
      %p91 = scmp.eq.s32.totalorder %s22, 1
      %p92 = por %p90, %p91
      %p94 = scmp.ne.s32.totalorder %s77, %s93
      %p95 = scmp.eq.s32.totalorder %s22, 0
      %p96 = por %p94, %p95
      %s97 = ssub.s32 %s16, %s23
      %p98 = scmp.eq.s32.totalorder %s97, 0
      %s100 = sadd.s32 %s99, 1
      %s101 = scalar_select %p98, %s99, %s100
      %p104 = pneg %p98
      %p105 = scmp.eq.s32.totalorder %s16, 1
      %p106 = por %p104, %p105
      %p107 = scmp.ne.s32.totalorder %s99, %s102
      %p108 = scmp.eq.s32.totalorder %s16, 0
      %p109 = por %p107, %p108
      %p110 = scmp.ne.s32.totalorder %s99, %s102
      %p111 = scmp.eq.s32.totalorder %s21, 1
      %p112 = por %p110, %p111
      %p113 = scmp.ne.s32.totalorder %s102, %s103
      %p114 = scmp.eq.s32.totalorder %s21, 0
      %p115 = por %p113, %p114
      %p116 = scmp.ne.s32.totalorder %s102, %s103
      %p117 = scmp.eq.s32.totalorder %s22, 1
      %p118 = por %p116, %p117
      %p120 = scmp.ne.s32.totalorder %s103, %s119
      %p121 = scmp.eq.s32.totalorder %s22, 0
      %p122 = por %p120, %p121
      %p123 = scmp.le.s32.totalorder 1, %s16
      %p124 = scmp.lt.s32.totalorder %s16, 3
      %p125 = pnand %p123, %p124
      %p126 = pneg %p125
      // Predicated region
      $region9: #{tpu_custom_call.1} parent=5 // pred_check
        _
      $region10: #{tpu_custom_call.1} parent=5 // pred_check_branch
        %128 = sbr.rel (%p125) target = $region12
      $region11: #{tpu_custom_call.1} parent=5 // pred_region
        %s129 = ssub.s32 %s16, 1
        // Predicated region
        $region13: #{tpu_custom_call.1} parent=11 // pred_check
          %p130 = pneg %p63
        $region14: #{tpu_custom_call.1} parent=11 // pred_check_branch
          %132 = sbr.rel (%p130) target = $region16
        $region15: #{tpu_custom_call.1} parent=11 // pred_region
          %s134 = ssub.s32 8192, 8192
          %135 = vsyncadd [#allocation6], %s134
          %s136 = sshll.u32 [#allocation5], 4
          %s137 = int_to_ptr.vmem [resolvable:$true] %s136
          %142 = dma.hbm_to_vmem [thread:$0]  %s1, 8192, %s137, [#allocation6], 512, 512, 32
        $region16: #{tpu_custom_call.1} parent=11 // pred_fallthru
          _
      $region12: #{tpu_custom_call.1} parent=5 // pred_fallthru
        _
      %p143 = scmp.lt.s32.totalorder %s16, 2
      // Predicated region
      $region17: #{tpu_custom_call.1} parent=5 // pred_check
        %p144 = pneg %p143
      $region18: #{tpu_custom_call.1} parent=5 // pred_check_branch
        %146 = sbr.rel (%p144) target = $region20
      $region19: #{tpu_custom_call.1} parent=5 // pred_region
        // Predicated region
        $region21: #{tpu_custom_call.1} parent=19 // pred_check
          %p147 = pneg %p36
        $region22: #{tpu_custom_call.1} parent=19 // pred_check_branch
          %149 = sbr.rel (%p147) target = $region24
        $region23: #{tpu_custom_call.1} parent=19 // pred_region
          %s150 = sand.u32 %s26, 1
          %s151 = scalar_lea.sflag [#allocation3], %s150
          %s152 = sand.u32 %s26, 1
          %s153 = smul.addr %s152, 256
          %s154 = scalar_lea.vmem [#allocation2], %s153
          %s156 = ssub.s32 4096, 4096
          %157 = vsyncadd %s151, %s156
          %s158 = smul.addr %s16, 4
          %s159 = smul.addr %s158, 128
          %s160 = scalar_lea.hbm %s0, %s159
          %s161 = sshll.u32 %s154, 4
          %s162 = int_to_ptr.vmem [resolvable:$true] %s161
          %167 = dma.hbm_to_vmem [thread:$0]  %s160, 4096, %s162, %s151, 1024, 512, 32
        $region24: #{tpu_custom_call.1} parent=19 // pred_fallthru
          _
        // Predicated region
        $region25: #{tpu_custom_call.1} parent=19 // pred_check
          %p168 = pneg %p83
        $region26: #{tpu_custom_call.1} parent=19 // pred_check_branch
          %170 = sbr.rel (%p168) target = $region28
        $region27: #{tpu_custom_call.1} parent=19 // pred_region
          %p171 = scmp.lt.s32.totalorder %s16, 1
          %s172 = scalar_select %p171, %s16, 1
          %s173 = smul.addr %s172, 8
          %s174 = scalar_lea.vmem %s2, %s173
        $region28: #{tpu_custom_call.1} parent=19 // pred_fallthru
          _
      $region20: #{tpu_custom_call.1} parent=5 // pred_fallthru
        _
      %p175 = scmp.le.s32.totalorder 1, %s16
      %p176 = scmp.lt.s32.totalorder %s16, 3
      %p177 = pnand %p175, %p176
      %p178 = pneg %p177
      // Predicated region
      $region29: #{tpu_custom_call.1} parent=5 // pred_check
        _
      $region30: #{tpu_custom_call.1} parent=5 // pred_check_branch
        %180 = sbr.rel (%p177) target = $region32
      $region31: #{tpu_custom_call.1} parent=5 // pred_region
        %s181 = ssub.s32 %s16, 1
        %s182 = sand.u32 %s29, 1
        %s183 = scalar_lea.sflag [#allocation3], %s182
        %s184 = sand.u32 %s29, 1
        %s185 = smul.addr %s184, 256
        %s186 = scalar_lea.vmem [#allocation2], %s185
        // Predicated region
        $region33: #{tpu_custom_call.1} parent=31 // pred_check
          %p187 = pneg %p42
        $region34: #{tpu_custom_call.1} parent=31 // pred_check_branch
          %189 = sbr.rel (%p187) target = $region36
        $region35: #{tpu_custom_call.1} parent=31 // pred_region
          %190 = dma.done %s183, 4096
        $region36: #{tpu_custom_call.1} parent=31 // pred_fallthru
          _
        // Predicated region
        $region37: #{tpu_custom_call.1} parent=31 // pred_check
          %p191 = pneg %p63
        $region38: #{tpu_custom_call.1} parent=31 // pred_check_branch
          %193 = sbr.rel (%p191) target = $region40
        $region39: #{tpu_custom_call.1} parent=31 // pred_region
          %194 = dma.done [#allocation6], 8192
        $region40: #{tpu_custom_call.1} parent=31 // pred_fallthru
          _
        %s195 = sand.u32 %s29, 1
        %s196 = scalar_lea.sflag [#allocation3], %s195
        %s197 = sand.u32 %s29, 1
        %s198 = smul.addr %s197, 256
        %s199 = scalar_lea.vmem [#allocation2], %s198
        %p200 = pneg %p42
        %p201 = pneg %p39
        %p202 = pneg %p63
        %p203 = pneg %p60
        %p204 = scmp.lt.s32.totalorder %s21, 1
        %s205 = scalar_select %p204, %s21, 1
        %s206 = smul.addr %s205, 8
        %s207 = scalar_lea.vmem %s2, %s206
        %p208 = pneg %p89
        %p209 = pneg %p86
        %p210 = pneg %p115
        %p211 = pneg %p112
        %s212 = sand.u32 %s102, 1
        %s213 = scalar_lea.sflag [#allocation4], %s212
        %s214 = sand.u32 %s102, 1
        %s215 = smul.addr %s214, 8
        %s216 = scalar_lea.vmem [#allocation7], %s215
        %p217 = scmp.lt.s32.totalorder %s21, 1
        %s218 = scalar_select %p217, %s21, 1
        %s219 = smul.addr %s218, 8
        %s220 = scalar_lea.vmem %s2, %s219
        %v221 = vld [vmem:[#allocation5] sm:$0xff]
        %v222 = vld [vmem:[#allocation5 + $0x8] sm:$0xff]
        %v223 = vld [vmem:[#allocation5 + $0x10] sm:$0xff]
        %v224 = vld [vmem:[#allocation5 + $0x18] sm:$0xff]
        %v225 = vld [vmem:[#allocation5 + $0x20] sm:$0xff]
        %v226 = vld [vmem:[#allocation5 + $0x28] sm:$0xff]
        %v227 = vld [vmem:[#allocation5 + $0x30] sm:$0xff]
        %v228 = vld [vmem:[#allocation5 + $0x38] sm:$0xff]
        %v229 = vld [vmem:[#allocation5 + $0x40] sm:$0xff]
        %v230 = vld [vmem:[#allocation5 + $0x48] sm:$0xff]
        %v231 = vld [vmem:[#allocation5 + $0x50] sm:$0xff]
        %v232 = vld [vmem:[#allocation5 + $0x58] sm:$0xff]
        %v233 = vld [vmem:[#allocation5 + $0x60] sm:$0xff]
        %v234 = vld [vmem:[#allocation5 + $0x68] sm:$0xff]
        %v235 = vld [vmem:[#allocation5 + $0x70] sm:$0xff]
        %v236 = vld [vmem:[#allocation5 + $0x78] sm:$0xff]
        %v237 = vld [vmem:[#allocation5 + $0x80] sm:$0xff]
        %v238 = vld [vmem:[#allocation5 + $0x88] sm:$0xff]
        %v239 = vld [vmem:[#allocation5 + $0x90] sm:$0xff]
        %v240 = vld [vmem:[#allocation5 + $0x98] sm:$0xff]
        %v241 = vld [vmem:[#allocation5 + $0xa0] sm:$0xff]
        %v242 = vld [vmem:[#allocation5 + $0xa8] sm:$0xff]
        %v243 = vld [vmem:[#allocation5 + $0xb0] sm:$0xff]
        %v244 = vld [vmem:[#allocation5 + $0xb8] sm:$0xff]
        %v245 = vld [vmem:[#allocation5 + $0xc0] sm:$0xff]
        %v246 = vld [vmem:[#allocation5 + $0xc8] sm:$0xff]
        %v247 = vld [vmem:[#allocation5 + $0xd0] sm:$0xff]
        %v248 = vld [vmem:[#allocation5 + $0xd8] sm:$0xff]
        %v249 = vld [vmem:[#allocation5 + $0xe0] sm:$0xff]
        %v250 = vld [vmem:[#allocation5 + $0xe8] sm:$0xff]
        %v251 = vld [vmem:[#allocation5 + $0xf0] sm:$0xff]
        %v252 = vld [vmem:[#allocation5 + $0xf8] sm:$0xff]
        %v253 = vld [vmem:[#allocation5 + $0x100] sm:$0xff]
        %v254 = vld [vmem:[#allocation5 + $0x108] sm:$0xff]
        %v255 = vld [vmem:[#allocation5 + $0x110] sm:$0xff]
        %v256 = vld [vmem:[#allocation5 + $0x118] sm:$0xff]
        %v257 = vld [vmem:[#allocation5 + $0x120] sm:$0xff]
        %v258 = vld [vmem:[#allocation5 + $0x128] sm:$0xff]
        %v259 = vld [vmem:[#allocation5 + $0x130] sm:$0xff]
        %v260 = vld [vmem:[#allocation5 + $0x138] sm:$0xff]
        %v261 = vld [vmem:[#allocation5 + $0x140] sm:$0xff]
        %v262 = vld [vmem:[#allocation5 + $0x148] sm:$0xff]
        %v263 = vld [vmem:[#allocation5 + $0x150] sm:$0xff]
        %v264 = vld [vmem:[#allocation5 + $0x158] sm:$0xff]
        %v265 = vld [vmem:[#allocation5 + $0x160] sm:$0xff]
        %v266 = vld [vmem:[#allocation5 + $0x168] sm:$0xff]
        %v267 = vld [vmem:[#allocation5 + $0x170] sm:$0xff]
        %v268 = vld [vmem:[#allocation5 + $0x178] sm:$0xff]
        %v269 = vld [vmem:[#allocation5 + $0x180] sm:$0xff]
        %v270 = vld [vmem:[#allocation5 + $0x188] sm:$0xff]
        %v271 = vld [vmem:[#allocation5 + $0x190] sm:$0xff]
        %v272 = vld [vmem:[#allocation5 + $0x198] sm:$0xff]
        %v273 = vld [vmem:[#allocation5 + $0x1a0] sm:$0xff]
        %v274 = vld [vmem:[#allocation5 + $0x1a8] sm:$0xff]
        %v275 = vld [vmem:[#allocation5 + $0x1b0] sm:$0xff]
        %v276 = vld [vmem:[#allocation5 + $0x1b8] sm:$0xff]
        %v277 = vld [vmem:[#allocation5 + $0x1c0] sm:$0xff]
        %v278 = vld [vmem:[#allocation5 + $0x1c8] sm:$0xff]
        %v279 = vld [vmem:[#allocation5 + $0x1d0] sm:$0xff]
        %v280 = vld [vmem:[#allocation5 + $0x1d8] sm:$0xff]
        %v281 = vld [vmem:[#allocation5 + $0x1e0] sm:$0xff]
        %v282 = vld [vmem:[#allocation5 + $0x1e8] sm:$0xff]
        %v283 = vld [vmem:[#allocation5 + $0x1f0] sm:$0xff]
        %v284 = vld [vmem:[#allocation5 + $0x1f8] sm:$0xff]
        %v285 = vld [vmem:[%s220] sm:$0xff]
        %v286 = vld [vmem:[%s186] sm:$0xff]
        %v287 = vld [vmem:[%s186 + $0x8] sm:$0xff]
        %v288 = vld [vmem:[%s186 + $0x10] sm:$0xff]
        %v289 = vld [vmem:[%s186 + $0x18] sm:$0xff]
        %290 = vmatprep.subr.mxu0 %v222
        %291 = vmatpush1.msra.mxu0 %v221
        %292 = vmatprep.subr.mxu0 %v226
        %293 = vmatpush1.msra.mxu0 %v225
        %294 = vmatprep.subr.mxu0 %v230
        %295 = vmatpush1.msra.mxu0 %v229
        %296 = vmatprep.subr.mxu0 %v234
        %297 = vmatpush1.msra.mxu0 %v233
        %298 = vmatprep.subr.mxu0 %v238
        %299 = vmatpush1.msra.mxu0 %v237
        %300 = vmatprep.subr.mxu0 %v242
        %301 = vmatpush1.msra.mxu0 %v241
        %302 = vmatprep.subr.mxu0 %v246
        %303 = vmatpush1.msra.mxu0 %v245
        %304 = vmatprep.subr.mxu0 %v250
        %305 = vmatpush1.msra.mxu0 %v249
        %306 = vmatprep.subr.mxu0 %v254
        %307 = vmatpush1.msra.mxu0 %v253
        %308 = vmatprep.subr.mxu0 %v258
        %309 = vmatpush1.msra.mxu0 %v257
        %310 = vmatprep.subr.mxu0 %v262
        %311 = vmatpush1.msra.mxu0 %v261
        %312 = vmatprep.subr.mxu0 %v266
        %313 = vmatpush1.msra.mxu0 %v265
        %314 = vmatprep.subr.mxu0 %v270
        %315 = vmatpush1.msra.mxu0 %v269
        %316 = vmatprep.subr.mxu0 %v274
        %317 = vmatpush1.msra.mxu0 %v273
        %318 = vmatprep.subr.mxu0 %v278
        %319 = vmatpush1.msra.mxu0 %v277
        %320 = vmatprep.subr.mxu0 %v282
        %321 = vmatpush1.msra.mxu0 %v281
        %322 = vmatprep.subr.mxu0 0.0
        %323 = vmatpush1.msra.mxu0 0.0
        %324 = vmatprep.subr.mxu0 0.0
        %325 = vmatpush1.msra.mxu0 0.0
        %326 = vmatprep.subr.mxu0 0.0
        %327 = vmatpush1.msra.mxu0 0.0
        %328 = vmatprep.subr.mxu0 0.0
        %329 = vmatpush1.msra.mxu0 0.0
        %330 = vmatprep.subr.mxu0 0.0
        %331 = vmatpush1.msra.mxu0 0.0
        %332 = vmatprep.subr.mxu0 0.0
        %333 = vmatpush1.msra.mxu0 0.0
        %334 = vmatprep.subr.mxu0 0.0
        %335 = vmatpush1.msra.mxu0 0.0
        %336 = vmatprep.subr.mxu0 0.0
        %337 = vmatpush1.msra.mxu0 0.0
        %338 = vmatprep.subr.mxu0 0.0
        %339 = vmatpush1.msra.mxu0 0.0
        %340 = vmatprep.subr.mxu0 0.0
        %341 = vmatpush1.msra.mxu0 0.0
        %342 = vmatprep.subr.mxu0 0.0
        %343 = vmatpush1.msra.mxu0 0.0
        %344 = vmatprep.subr.mxu0 0.0
        %345 = vmatpush1.msra.mxu0 0.0
        %346 = vmatprep.subr.mxu0 0.0
        %347 = vmatpush1.msra.mxu0 0.0
        %348 = vmatprep.subr.mxu0 0.0
        %349 = vmatpush1.msra.mxu0 0.0
        %350 = vmatprep.subr.mxu0 0.0
        %351 = vmatpush1.msra.mxu0 0.0
        %352 = vmatprep.subr.mxu0 0.0
        %353 = vmatpush1.msra.mxu0 0.0
        %354 = vmatprep.mubr.f32.mxu0 0.0
        %355 = vmatmul.mubr.f32.gmra.mrb[0].mxu0 0.0
        %v356 = vpop.f32.mrb[0].mxu0
        %v357 = vadd.f32 0.0, %v356
        %v358 = vpop.f32.mrb[0].mxu0
        %v359 = vadd.f32 0.0, %v358
        %360 = vdwg.mxu0
        %361 = vmatprep.subr.mxu0 %v224
        %362 = vmatpush1.msra.mxu0 %v223
        %363 = vmatprep.subr.mxu0 %v228
        %364 = vmatpush1.msra.mxu0 %v227
        %365 = vmatprep.subr.mxu0 %v232
        %366 = vmatpush1.msra.mxu0 %v231
        %367 = vmatprep.subr.mxu0 %v236
        %368 = vmatpush1.msra.mxu0 %v235
        %369 = vmatprep.subr.mxu0 %v240
        %370 = vmatpush1.msra.mxu0 %v239
        %371 = vmatprep.subr.mxu0 %v244
        %372 = vmatpush1.msra.mxu0 %v243
        %373 = vmatprep.subr.mxu0 %v248
        %374 = vmatpush1.msra.mxu0 %v247
        %375 = vmatprep.subr.mxu0 %v252
        %376 = vmatpush1.msra.mxu0 %v251
        %377 = vmatprep.subr.mxu0 %v256
        %378 = vmatpush1.msra.mxu0 %v255
        %379 = vmatprep.subr.mxu0 %v260
        %380 = vmatpush1.msra.mxu0 %v259
        %381 = vmatprep.subr.mxu0 %v264
        %382 = vmatpush1.msra.mxu0 %v263
        %383 = vmatprep.subr.mxu0 %v268
        %384 = vmatpush1.msra.mxu0 %v267
        %385 = vmatprep.subr.mxu0 %v272
        %386 = vmatpush1.msra.mxu0 %v271
        %387 = vmatprep.subr.mxu0 %v276
        %388 = vmatpush1.msra.mxu0 %v275
        %389 = vmatprep.subr.mxu0 %v280
        %390 = vmatpush1.msra.mxu0 %v279
        %391 = vmatprep.subr.mxu0 %v284
        %392 = vmatpush1.msra.mxu0 %v283
        %393 = vmatprep.subr.mxu0 0.0
        %394 = vmatpush1.msra.mxu0 0.0
        %395 = vmatprep.subr.mxu0 0.0
        %396 = vmatpush1.msra.mxu0 0.0
        %397 = vmatprep.subr.mxu0 0.0
        %398 = vmatpush1.msra.mxu0 0.0
        %399 = vmatprep.subr.mxu0 0.0
        %400 = vmatpush1.msra.mxu0 0.0
        %401 = vmatprep.subr.mxu0 0.0
        %402 = vmatpush1.msra.mxu0 0.0
        %403 = vmatprep.subr.mxu0 0.0
        %404 = vmatpush1.msra.mxu0 0.0
        %405 = vmatprep.subr.mxu0 0.0
        %406 = vmatpush1.msra.mxu0 0.0
        %407 = vmatprep.subr.mxu0 0.0
        %408 = vmatpush1.msra.mxu0 0.0
        %409 = vmatprep.subr.mxu0 0.0
        %410 = vmatpush1.msra.mxu0 0.0
        %411 = vmatprep.subr.mxu0 0.0
        %412 = vmatpush1.msra.mxu0 0.0
        %413 = vmatprep.subr.mxu0 0.0
        %414 = vmatpush1.msra.mxu0 0.0
        %415 = vmatprep.subr.mxu0 0.0
        %416 = vmatpush1.msra.mxu0 0.0
        %417 = vmatprep.subr.mxu0 0.0
        %418 = vmatpush1.msra.mxu0 0.0
        %419 = vmatprep.subr.mxu0 0.0
        %420 = vmatpush1.msra.mxu0 0.0
        %421 = vmatprep.subr.mxu0 0.0
        %422 = vmatpush1.msra.mxu0 0.0
        %423 = vmatprep.subr.mxu0 0.0
        %424 = vmatpush1.msra.mxu0 0.0
        %425 = vmatprep.mubr.f32.mxu0 0.0
        %426 = vmatmul.mubr.f32.gmra.mrb[0].mxu0 0.0
        %v427 = vpop.f32.mrb[0].mxu0
        %v428 = vadd.f32 0.0, %v427
        %v429 = vpop.f32.mrb[0].mxu0
        %v430 = vadd.f32 0.0, %v429
        %431 = vdwg.mxu0
        %v432 = vadd.f32 %v286, %v357
        %v433 = vadd.f32 %v287, %v359
        %v434 = vadd.f32 %v288, %v428
        %v435 = vadd.f32 %v289, %v430
        %v436 = vxor.u32 %v432, 2147483648
        %v437 = vmul.f32 %v436, 1.442695
        %v438 = vpow.pop %v437
        %v439 = vadd.f32 %v438, 1.0
        %v440 = vrcp.pop %v439
        %v441 = vmul.f32 1.0, %v440
        %v442 = vxor.u32 %v433, 2147483648
        %v443 = vmul.f32 %v442, 1.442695
        %v444 = vpow.pop %v443
        %v445 = vadd.f32 %v444, 1.0
        %v446 = vrcp.pop %v445
        %v447 = vmul.f32 1.0, %v446
        %v448 = vtanh.pop %v434
        %v449 = vxor.u32 %v435, 2147483648
        %v450 = vmul.f32 %v449, 1.442695
        %v451 = vpow.pop %v450
        %v452 = vadd.f32 %v451, 1.0
        %v453 = vrcp.pop %v452
        %v454 = vmul.f32 1.0, %v453
        %v455 = vmul.f32 %v447, 0.0
        %v456 = vmul.f32 %v441, %v448
        %v457 = vadd.f32 %v455, %v456
        %v458 = vtanh.pop %v457
        %v459 = vmul.f32 %v454, %v458
        %vm460 = vcmp.gt.s32.totalorder %v285, 0
        %v461 = vsel %vm460, 1, 0
        %462 = vset.pattern.permute.xlu0 0
        %463 = vperm.xlu0 %462, %v461
        %v464 = vpop.permute.xlu0 %463
        %vm465 = vcmp.eq.s32.totalorder %v464, 1
        %v466 = vsel %vm465, %v459, 0.0
        %v467 = vsel %vm465, %v457, 0.0
        %s468 = scalar_lea.vmem %s186, 32 [#allocation2]
        %v469 = vld [vmem:[%s468] sm:$0xff]
        %v470 = vld [vmem:[%s468 + $0x8] sm:$0xff]
        %v471 = vld [vmem:[%s468 + $0x10] sm:$0xff]
        %v472 = vld [vmem:[%s468 + $0x18] sm:$0xff]
        %473 = vmatprep.subr.mxu0 %v222
        %474 = vmatpush1.msra.mxu0 %v221
        %475 = vmatprep.subr.mxu0 %v226
        %476 = vmatpush1.msra.mxu0 %v225
        %477 = vmatprep.subr.mxu0 %v230
        %478 = vmatpush1.msra.mxu0 %v229
        %479 = vmatprep.subr.mxu0 %v234
        %480 = vmatpush1.msra.mxu0 %v233
        %481 = vmatprep.subr.mxu0 %v238
        %482 = vmatpush1.msra.mxu0 %v237
        %483 = vmatprep.subr.mxu0 %v242
        %484 = vmatpush1.msra.mxu0 %v241
        %485 = vmatprep.subr.mxu0 %v246
        %486 = vmatpush1.msra.mxu0 %v245
        %487 = vmatprep.subr.mxu0 %v250
        %488 = vmatpush1.msra.mxu0 %v249
        %489 = vmatprep.subr.mxu0 %v254
        %490 = vmatpush1.msra.mxu0 %v253
        %491 = vmatprep.subr.mxu0 %v258
        %492 = vmatpush1.msra.mxu0 %v257
        %493 = vmatprep.subr.mxu0 %v262
        %494 = vmatpush1.msra.mxu0 %v261
        %495 = vmatprep.subr.mxu0 %v266
        %496 = vmatpush1.msra.mxu0 %v265
        %497 = vmatprep.subr.mxu0 %v270
        %498 = vmatpush1.msra.mxu0 %v269
        %499 = vmatprep.subr.mxu0 %v274
        %500 = vmatpush1.msra.mxu0 %v273
        %501 = vmatprep.subr.mxu0 %v278
        %502 = vmatpush1.msra.mxu0 %v277
        %503 = vmatprep.subr.mxu0 %v282
        %504 = vmatpush1.msra.mxu0 %v281
        %505 = vmatprep.subr.mxu0 0.0
        %506 = vmatpush1.msra.mxu0 0.0
        %507 = vmatprep.subr.mxu0 0.0
        %508 = vmatpush1.msra.mxu0 0.0
        %509 = vmatprep.subr.mxu0 0.0
        %510 = vmatpush1.msra.mxu0 0.0
        %511 = vmatprep.subr.mxu0 0.0
        %512 = vmatpush1.msra.mxu0 0.0
        %513 = vmatprep.subr.mxu0 0.0
        %514 = vmatpush1.msra.mxu0 0.0
        %515 = vmatprep.subr.mxu0 0.0
        %516 = vmatpush1.msra.mxu0 0.0
        %517 = vmatprep.subr.mxu0 0.0
        %518 = vmatpush1.msra.mxu0 0.0
        %519 = vmatprep.subr.mxu0 0.0
        %520 = vmatpush1.msra.mxu0 0.0
        %521 = vmatprep.subr.mxu0 0.0
        %522 = vmatpush1.msra.mxu0 0.0
        %523 = vmatprep.subr.mxu0 0.0
        %524 = vmatpush1.msra.mxu0 0.0
        %525 = vmatprep.subr.mxu0 0.0
        %526 = vmatpush1.msra.mxu0 0.0
        %527 = vmatprep.subr.mxu0 0.0
        %528 = vmatpush1.msra.mxu0 0.0
        %529 = vmatprep.subr.mxu0 0.0
        %530 = vmatpush1.msra.mxu0 0.0
        %531 = vmatprep.subr.mxu0 0.0
        %532 = vmatpush1.msra.mxu0 0.0
        %533 = vmatprep.subr.mxu0 0.0
        %534 = vmatpush1.msra.mxu0 0.0
        %535 = vmatprep.subr.mxu0 0.0
        %536 = vmatpush1.msra.mxu0 0.0
        %537 = vmatprep.mubr.f32.mxu0 0.0
        %538 = vmatmul.mubr.f32.gmra.mrb[0].mxu0 %v466
        %v539 = vpop.f32.mrb[0].mxu0
        %v540 = vadd.f32 0.0, %v539
        %v541 = vpop.f32.mrb[0].mxu0
        %v542 = vadd.f32 0.0, %v541
        %543 = vdwg.mxu0
        %544 = vmatprep.subr.mxu0 %v224
        %545 = vmatpush1.msra.mxu0 %v223
        %546 = vmatprep.subr.mxu0 %v228
        %547 = vmatpush1.msra.mxu0 %v227
        %548 = vmatprep.subr.mxu0 %v232
        %549 = vmatpush1.msra.mxu0 %v231
        %550 = vmatprep.subr.mxu0 %v236
        %551 = vmatpush1.msra.mxu0 %v235
        %552 = vmatprep.subr.mxu0 %v240
        %553 = vmatpush1.msra.mxu0 %v239
        %554 = vmatprep.subr.mxu0 %v244
        %555 = vmatpush1.msra.mxu0 %v243
        %556 = vmatprep.subr.mxu0 %v248
        %557 = vmatpush1.msra.mxu0 %v247
        %558 = vmatprep.subr.mxu0 %v252
        %559 = vmatpush1.msra.mxu0 %v251
        %560 = vmatprep.subr.mxu0 %v256
        %561 = vmatpush1.msra.mxu0 %v255
        %562 = vmatprep.subr.mxu0 %v260
        %563 = vmatpush1.msra.mxu0 %v259
        %564 = vmatprep.subr.mxu0 %v264
        %565 = vmatpush1.msra.mxu0 %v263
        %566 = vmatprep.subr.mxu0 %v268
        %567 = vmatpush1.msra.mxu0 %v267
        %568 = vmatprep.subr.mxu0 %v272
        %569 = vmatpush1.msra.mxu0 %v271
        %570 = vmatprep.subr.mxu0 %v276
        %571 = vmatpush1.msra.mxu0 %v275
        %572 = vmatprep.subr.mxu0 %v280
        %573 = vmatpush1.msra.mxu0 %v279
        %574 = vmatprep.subr.mxu0 %v284
        %575 = vmatpush1.msra.mxu0 %v283
        %576 = vmatprep.subr.mxu0 0.0
        %577 = vmatpush1.msra.mxu0 0.0
        %578 = vmatprep.subr.mxu0 0.0
        %579 = vmatpush1.msra.mxu0 0.0
        %580 = vmatprep.subr.mxu0 0.0
        %581 = vmatpush1.msra.mxu0 0.0
        %582 = vmatprep.subr.mxu0 0.0
        %583 = vmatpush1.msra.mxu0 0.0
        %584 = vmatprep.subr.mxu0 0.0
        %585 = vmatpush1.msra.mxu0 0.0
        %586 = vmatprep.subr.mxu0 0.0
        %587 = vmatpush1.msra.mxu0 0.0
        %588 = vmatprep.subr.mxu0 0.0
        %589 = vmatpush1.msra.mxu0 0.0
        %590 = vmatprep.subr.mxu0 0.0
        %591 = vmatpush1.msra.mxu0 0.0
        %592 = vmatprep.subr.mxu0 0.0
        %593 = vmatpush1.msra.mxu0 0.0
        %594 = vmatprep.subr.mxu0 0.0
        %595 = vmatpush1.msra.mxu0 0.0
        %596 = vmatprep.subr.mxu0 0.0
        %597 = vmatpush1.msra.mxu0 0.0
        %598 = vmatprep.subr.mxu0 0.0
        %599 = vmatpush1.msra.mxu0 0.0
        %600 = vmatprep.subr.mxu0 0.0
        %601 = vmatpush1.msra.mxu0 0.0
        %602 = vmatprep.subr.mxu0 0.0
        %603 = vmatpush1.msra.mxu0 0.0
        %604 = vmatprep.subr.mxu0 0.0
        %605 = vmatpush1.msra.mxu0 0.0
        %606 = vmatprep.subr.mxu0 0.0
        %607 = vmatpush1.msra.mxu0 0.0
        %608 = vmatprep.mubr.f32.mxu0 0.0
        %609 = vmatmul.mubr.f32.gmra.mrb[0].mxu0 %v466
        %v610 = vpop.f32.mrb[0].mxu0
        %v611 = vadd.f32 0.0, %v610
        %v612 = vpop.f32.mrb[0].mxu0
        %v613 = vadd.f32 0.0, %v612
        %614 = vdwg.mxu0
        %v615 = vadd.f32 %v469, %v540
        %v616 = vadd.f32 %v470, %v542
        %v617 = vadd.f32 %v471, %v611
        %v618 = vadd.f32 %v472, %v613
        %v619 = vxor.u32 %v615, 2147483648
        %v620 = vmul.f32 %v619, 1.442695
        %v621 = vpow.pop %v620
        %v622 = vadd.f32 %v621, 1.0
        %v623 = vrcp.pop %v622
        %v624 = vmul.f32 1.0, %v623
        %v625 = vxor.u32 %v616, 2147483648
        %v626 = vmul.f32 %v625, 1.442695
        %v627 = vpow.pop %v626
        %v628 = vadd.f32 %v627, 1.0
        %v629 = vrcp.pop %v628
        %v630 = vmul.f32 1.0, %v629
        %v631 = vtanh.pop %v617
        %v632 = vxor.u32 %v618, 2147483648
        %v633 = vmul.f32 %v632, 1.442695
        %v634 = vpow.pop %v633
        %v635 = vadd.f32 %v634, 1.0
        %v636 = vrcp.pop %v635
        %v637 = vmul.f32 1.0, %v636
        %v638 = vmul.f32 %v630, %v467
        %v639 = vmul.f32 %v624, %v631
        %v640 = vadd.f32 %v638, %v639
        %v641 = vtanh.pop %v640
        %v642 = vmul.f32 %v637, %v641
        %vm643 = vcmp.gt.s32.totalorder %v285, 1
        %v644 = vsel %vm643, 1, 0
        %645 = vset.pattern.permute.xlu0 0
        %646 = vperm.xlu0 %645, %v644
        %v647 = vpop.permute.xlu0 %646
        %vm648 = vcmp.eq.s32.totalorder %v647, 1
        %v649 = vsel %vm648, %v642, %v466
        %v650 = vsel %vm648, %v640, %v467
        %s651 = scalar_lea.vmem %s186, 64 [#allocation2]
        %v652 = vld [vmem:[%s651] sm:$0xff]
        %v653 = vld [vmem:[%s651 + $0x8] sm:$0xff]
        %v654 = vld [vmem:[%s651 + $0x10] sm:$0xff]
        %v655 = vld [vmem:[%s651 + $0x18] sm:$0xff]
        %656 = vmatprep.subr.mxu0 %v222
        %657 = vmatpush1.msra.mxu0 %v221
        %658 = vmatprep.subr.mxu0 %v226
        %659 = vmatpush1.msra.mxu0 %v225
        %660 = vmatprep.subr.mxu0 %v230
        %661 = vmatpush1.msra.mxu0 %v229
        %662 = vmatprep.subr.mxu0 %v234
        %663 = vmatpush1.msra.mxu0 %v233
        %664 = vmatprep.subr.mxu0 %v238
        %665 = vmatpush1.msra.mxu0 %v237
        %666 = vmatprep.subr.mxu0 %v242
        %667 = vmatpush1.msra.mxu0 %v241
        %668 = vmatprep.subr.mxu0 %v246
        %669 = vmatpush1.msra.mxu0 %v245
        %670 = vmatprep.subr.mxu0 %v250
        %671 = vmatpush1.msra.mxu0 %v249
        %672 = vmatprep.subr.mxu0 %v254
        %673 = vmatpush1.msra.mxu0 %v253
        %674 = vmatprep.subr.mxu0 %v258
        %675 = vmatpush1.msra.mxu0 %v257
        %676 = vmatprep.subr.mxu0 %v262
        %677 = vmatpush1.msra.mxu0 %v261
        %678 = vmatprep.subr.mxu0 %v266
        %679 = vmatpush1.msra.mxu0 %v265
        %680 = vmatprep.subr.mxu0 %v270
        %681 = vmatpush1.msra.mxu0 %v269
        %682 = vmatprep.subr.mxu0 %v274
        %683 = vmatpush1.msra.mxu0 %v273
        %684 = vmatprep.subr.mxu0 %v278
        %685 = vmatpush1.msra.mxu0 %v277
        %686 = vmatprep.subr.mxu0 %v282
        %687 = vmatpush1.msra.mxu0 %v281
        %688 = vmatprep.subr.mxu0 0.0
        %689 = vmatpush1.msra.mxu0 0.0
        %690 = vmatprep.subr.mxu0 0.0
        %691 = vmatpush1.msra.mxu0 0.0
        %692 = vmatprep.subr.mxu0 0.0
        %693 = vmatpush1.msra.mxu0 0.0
        %694 = vmatprep.subr.mxu0 0.0
        %695 = vmatpush1.msra.mxu0 0.0
        %696 = vmatprep.subr.mxu0 0.0
        %697 = vmatpush1.msra.mxu0 0.0
        %698 = vmatprep.subr.mxu0 0.0
        %699 = vmatpush1.msra.mxu0 0.0
        %700 = vmatprep.subr.mxu0 0.0
        %701 = vmatpush1.msra.mxu0 0.0
        %702 = vmatprep.subr.mxu0 0.0
        %703 = vmatpush1.msra.mxu0 0.0
        %704 = vmatprep.subr.mxu0 0.0
        %705 = vmatpush1.msra.mxu0 0.0
        %706 = vmatprep.subr.mxu0 0.0
        %707 = vmatpush1.msra.mxu0 0.0
        %708 = vmatprep.subr.mxu0 0.0
        %709 = vmatpush1.msra.mxu0 0.0
        %710 = vmatprep.subr.mxu0 0.0
        %711 = vmatpush1.msra.mxu0 0.0
        %712 = vmatprep.subr.mxu0 0.0
        %713 = vmatpush1.msra.mxu0 0.0
        %714 = vmatprep.subr.mxu0 0.0
        %715 = vmatpush1.msra.mxu0 0.0
        %716 = vmatprep.subr.mxu0 0.0
        %717 = vmatpush1.msra.mxu0 0.0
        %718 = vmatprep.subr.mxu0 0.0
        %719 = vmatpush1.msra.mxu0 0.0
        %720 = vmatprep.mubr.f32.mxu0 0.0
        %721 = vmatmul.mubr.f32.gmra.mrb[0].mxu0 %v649
        %v722 = vpop.f32.mrb[0].mxu0
        %v723 = vadd.f32 0.0, %v722
        %v724 = vpop.f32.mrb[0].mxu0
        %v725 = vadd.f32 0.0, %v724
        %726 = vdwg.mxu0
        %727 = vmatprep.subr.mxu0 %v224
        %728 = vmatpush1.msra.mxu0 %v223
        %729 = vmatprep.subr.mxu0 %v228
        %730 = vmatpush1.msra.mxu0 %v227
        %731 = vmatprep.subr.mxu0 %v232
        %732 = vmatpush1.msra.mxu0 %v231
        %733 = vmatprep.subr.mxu0 %v236
        %734 = vmatpush1.msra.mxu0 %v235
        %735 = vmatprep.subr.mxu0 %v240
        %736 = vmatpush1.msra.mxu0 %v239
        %737 = vmatprep.subr.mxu0 %v244
        %738 = vmatpush1.msra.mxu0 %v243
        %739 = vmatprep.subr.mxu0 %v248
        %740 = vmatpush1.msra.mxu0 %v247
        %741 = vmatprep.subr.mxu0 %v252
        %742 = vmatpush1.msra.mxu0 %v251
        %743 = vmatprep.subr.mxu0 %v256
        %744 = vmatpush1.msra.mxu0 %v255
        %745 = vmatprep.subr.mxu0 %v260
        %746 = vmatpush1.msra.mxu0 %v259
        %747 = vmatprep.subr.mxu0 %v264
        %748 = vmatpush1.msra.mxu0 %v263
        %749 = vmatprep.subr.mxu0 %v268
        %750 = vmatpush1.msra.mxu0 %v267
        %751 = vmatprep.subr.mxu0 %v272
        %752 = vmatpush1.msra.mxu0 %v271
        %753 = vmatprep.subr.mxu0 %v276
        %754 = vmatpush1.msra.mxu0 %v275
        %755 = vmatprep.subr.mxu0 %v280
        %756 = vmatpush1.msra.mxu0 %v279
        %757 = vmatprep.subr.mxu0 %v284
        %758 = vmatpush1.msra.mxu0 %v283
        %759 = vmatprep.subr.mxu0 0.0
        %760 = vmatpush1.msra.mxu0 0.0
        %761 = vmatprep.subr.mxu0 0.0
        %762 = vmatpush1.msra.mxu0 0.0
        %763 = vmatprep.subr.mxu0 0.0
        %764 = vmatpush1.msra.mxu0 0.0
        %765 = vmatprep.subr.mxu0 0.0
        %766 = vmatpush1.msra.mxu0 0.0
        %767 = vmatprep.subr.mxu0 0.0
        %768 = vmatpush1.msra.mxu0 0.0
        %769 = vmatprep.subr.mxu0 0.0
        %770 = vmatpush1.msra.mxu0 0.0
        %771 = vmatprep.subr.mxu0 0.0
        %772 = vmatpush1.msra.mxu0 0.0
        %773 = vmatprep.subr.mxu0 0.0
        %774 = vmatpush1.msra.mxu0 0.0
        %775 = vmatprep.subr.mxu0 0.0
        %776 = vmatpush1.msra.mxu0 0.0
        %777 = vmatprep.subr.mxu0 0.0
        %778 = vmatpush1.msra.mxu0 0.0
        %779 = vmatprep.subr.mxu0 0.0
        %780 = vmatpush1.msra.mxu0 0.0
        %781 = vmatprep.subr.mxu0 0.0
        %782 = vmatpush1.msra.mxu0 0.0
        %783 = vmatprep.subr.mxu0 0.0
        %784 = vmatpush1.msra.mxu0 0.0
        %785 = vmatprep.subr.mxu0 0.0
        %786 = vmatpush1.msra.mxu0 0.0
        %787 = vmatprep.subr.mxu0 0.0
        %788 = vmatpush1.msra.mxu0 0.0
        %789 = vmatprep.subr.mxu0 0.0
        %790 = vmatpush1.msra.mxu0 0.0
        %791 = vmatprep.mubr.f32.mxu0 0.0
        %792 = vmatmul.mubr.f32.gmra.mrb[0].mxu0 %v649
        %v793 = vpop.f32.mrb[0].mxu0
        %v794 = vadd.f32 0.0, %v793
        %v795 = vpop.f32.mrb[0].mxu0
        %v796 = vadd.f32 0.0, %v795
        %797 = vdwg.mxu0
        %v798 = vadd.f32 %v652, %v723
        %v799 = vadd.f32 %v653, %v725
        %v800 = vadd.f32 %v654, %v794
        %v801 = vadd.f32 %v655, %v796
        %v802 = vxor.u32 %v798, 2147483648
        %v803 = vmul.f32 %v802, 1.442695
        %v804 = vpow.pop %v803
        %v805 = vadd.f32 %v804, 1.0
        %v806 = vrcp.pop %v805
        %v807 = vmul.f32 1.0, %v806
        %v808 = vxor.u32 %v799, 2147483648
        %v809 = vmul.f32 %v808, 1.442695
        %v810 = vpow.pop %v809
        %v811 = vadd.f32 %v810, 1.0
        %v812 = vrcp.pop %v811
        %v813 = vmul.f32 1.0, %v812
        %v814 = vtanh.pop %v800
        %v815 = vxor.u32 %v801, 2147483648
        %v816 = vmul.f32 %v815, 1.442695
        %v817 = vpow.pop %v816
        %v818 = vadd.f32 %v817, 1.0
        %v819 = vrcp.pop %v818
        %v820 = vmul.f32 1.0, %v819
        %v821 = vmul.f32 %v813, %v650
        %v822 = vmul.f32 %v807, %v814
        %v823 = vadd.f32 %v821, %v822
        %v824 = vtanh.pop %v823
        %v825 = vmul.f32 %v820, %v824
        %vm826 = vcmp.gt.s32.totalorder %v285, 2
        %v827 = vsel %vm826, 1, 0
        %828 = vset.pattern.permute.xlu0 0
        %829 = vperm.xlu0 %828, %v827
        %v830 = vpop.permute.xlu0 %829
        %vm831 = vcmp.eq.s32.totalorder %v830, 1
        %v832 = vsel %vm831, %v825, %v649
        %v833 = vsel %vm831, %v823, %v650
        %s834 = scalar_lea.vmem %s186, 96 [#allocation2]
        %v835 = vld [vmem:[%s834] sm:$0xff]
        %v836 = vld [vmem:[%s834 + $0x8] sm:$0xff]
        %v837 = vld [vmem:[%s834 + $0x10] sm:$0xff]
        %v838 = vld [vmem:[%s834 + $0x18] sm:$0xff]
        %839 = vmatprep.subr.mxu0 %v222
        %840 = vmatpush1.msra.mxu0 %v221
        %841 = vmatprep.subr.mxu0 %v226
        %842 = vmatpush1.msra.mxu0 %v225
        %843 = vmatprep.subr.mxu0 %v230
        %844 = vmatpush1.msra.mxu0 %v229
        %845 = vmatprep.subr.mxu0 %v234
        %846 = vmatpush1.msra.mxu0 %v233
        %847 = vmatprep.subr.mxu0 %v238
        %848 = vmatpush1.msra.mxu0 %v237
        %849 = vmatprep.subr.mxu0 %v242
        %850 = vmatpush1.msra.mxu0 %v241
        %851 = vmatprep.subr.mxu0 %v246
        %852 = vmatpush1.msra.mxu0 %v245
        %853 = vmatprep.subr.mxu0 %v250
        %854 = vmatpush1.msra.mxu0 %v249
        %855 = vmatprep.subr.mxu0 %v254
        %856 = vmatpush1.msra.mxu0 %v253
        %857 = vmatprep.subr.mxu0 %v258
        %858 = vmatpush1.msra.mxu0 %v257
        %859 = vmatprep.subr.mxu0 %v262
        %860 = vmatpush1.msra.mxu0 %v261
        %861 = vmatprep.subr.mxu0 %v266
        %862 = vmatpush1.msra.mxu0 %v265
        %863 = vmatprep.subr.mxu0 %v270
        %864 = vmatpush1.msra.mxu0 %v269
        %865 = vmatprep.subr.mxu0 %v274
        %866 = vmatpush1.msra.mxu0 %v273
        %867 = vmatprep.subr.mxu0 %v278
        %868 = vmatpush1.msra.mxu0 %v277
        %869 = vmatprep.subr.mxu0 %v282
        %870 = vmatpush1.msra.mxu0 %v281
        %871 = vmatprep.subr.mxu0 0.0
        %872 = vmatpush1.msra.mxu0 0.0
        %873 = vmatprep.subr.mxu0 0.0
        %874 = vmatpush1.msra.mxu0 0.0
        %875 = vmatprep.subr.mxu0 0.0
        %876 = vmatpush1.msra.mxu0 0.0
        %877 = vmatprep.subr.mxu0 0.0
        %878 = vmatpush1.msra.mxu0 0.0
        %879 = vmatprep.subr.mxu0 0.0
        %880 = vmatpush1.msra.mxu0 0.0
        %881 = vmatprep.subr.mxu0 0.0
        %882 = vmatpush1.msra.mxu0 0.0
        %883 = vmatprep.subr.mxu0 0.0
        %884 = vmatpush1.msra.mxu0 0.0
        %885 = vmatprep.subr.mxu0 0.0
        %886 = vmatpush1.msra.mxu0 0.0
        %887 = vmatprep.subr.mxu0 0.0
        %888 = vmatpush1.msra.mxu0 0.0
        %889 = vmatprep.subr.mxu0 0.0
        %890 = vmatpush1.msra.mxu0 0.0
        %891 = vmatprep.subr.mxu0 0.0
        %892 = vmatpush1.msra.mxu0 0.0
        %893 = vmatprep.subr.mxu0 0.0
        %894 = vmatpush1.msra.mxu0 0.0
        %895 = vmatprep.subr.mxu0 0.0
        %896 = vmatpush1.msra.mxu0 0.0
        %897 = vmatprep.subr.mxu0 0.0
        %898 = vmatpush1.msra.mxu0 0.0
        %899 = vmatprep.subr.mxu0 0.0
        %900 = vmatpush1.msra.mxu0 0.0
        %901 = vmatprep.subr.mxu0 0.0
        %902 = vmatpush1.msra.mxu0 0.0
        %903 = vmatprep.mubr.f32.mxu0 0.0
        %904 = vmatmul.mubr.f32.gmra.mrb[0].mxu0 %v832
        %v905 = vpop.f32.mrb[0].mxu0
        %v906 = vadd.f32 0.0, %v905
        %v907 = vpop.f32.mrb[0].mxu0
        %v908 = vadd.f32 0.0, %v907
        %909 = vdwg.mxu0
        %910 = vmatprep.subr.mxu0 %v224
        %911 = vmatpush1.msra.mxu0 %v223
        %912 = vmatprep.subr.mxu0 %v228
        %913 = vmatpush1.msra.mxu0 %v227
        %914 = vmatprep.subr.mxu0 %v232
        %915 = vmatpush1.msra.mxu0 %v231
        %916 = vmatprep.subr.mxu0 %v236
        %917 = vmatpush1.msra.mxu0 %v235
        %918 = vmatprep.subr.mxu0 %v240
        %919 = vmatpush1.msra.mxu0 %v239
        %920 = vmatprep.subr.mxu0 %v244
        %921 = vmatpush1.msra.mxu0 %v243
        %922 = vmatprep.subr.mxu0 %v248
        %923 = vmatpush1.msra.mxu0 %v247
        %924 = vmatprep.subr.mxu0 %v252
        %925 = vmatpush1.msra.mxu0 %v251
        %926 = vmatprep.subr.mxu0 %v256
        %927 = vmatpush1.msra.mxu0 %v255
        %928 = vmatprep.subr.mxu0 %v260
        %929 = vmatpush1.msra.mxu0 %v259
        %930 = vmatprep.subr.mxu0 %v264
        %931 = vmatpush1.msra.mxu0 %v263
        %932 = vmatprep.subr.mxu0 %v268
        %933 = vmatpush1.msra.mxu0 %v267
        %934 = vmatprep.subr.mxu0 %v272
        %935 = vmatpush1.msra.mxu0 %v271
        %936 = vmatprep.subr.mxu0 %v276
        %937 = vmatpush1.msra.mxu0 %v275
        %938 = vmatprep.subr.mxu0 %v280
        %939 = vmatpush1.msra.mxu0 %v279
        %940 = vmatprep.subr.mxu0 %v284
        %941 = vmatpush1.msra.mxu0 %v283
        %942 = vmatprep.subr.mxu0 0.0
        %943 = vmatpush1.msra.mxu0 0.0
        %944 = vmatprep.subr.mxu0 0.0
        %945 = vmatpush1.msra.mxu0 0.0
        %946 = vmatprep.subr.mxu0 0.0
        %947 = vmatpush1.msra.mxu0 0.0
        %948 = vmatprep.subr.mxu0 0.0
        %949 = vmatpush1.msra.mxu0 0.0
        %950 = vmatprep.subr.mxu0 0.0
        %951 = vmatpush1.msra.mxu0 0.0
        %952 = vmatprep.subr.mxu0 0.0
        %953 = vmatpush1.msra.mxu0 0.0
        %954 = vmatprep.subr.mxu0 0.0
        %955 = vmatpush1.msra.mxu0 0.0
        %956 = vmatprep.subr.mxu0 0.0
        %957 = vmatpush1.msra.mxu0 0.0
        %958 = vmatprep.subr.mxu0 0.0
        %959 = vmatpush1.msra.mxu0 0.0
        %960 = vmatprep.subr.mxu0 0.0
        %961 = vmatpush1.msra.mxu0 0.0
        %962 = vmatprep.subr.mxu0 0.0
        %963 = vmatpush1.msra.mxu0 0.0
        %964 = vmatprep.subr.mxu0 0.0
        %965 = vmatpush1.msra.mxu0 0.0
        %966 = vmatprep.subr.mxu0 0.0
        %967 = vmatpush1.msra.mxu0 0.0
        %968 = vmatprep.subr.mxu0 0.0
        %969 = vmatpush1.msra.mxu0 0.0
        %970 = vmatprep.subr.mxu0 0.0
        %971 = vmatpush1.msra.mxu0 0.0
        %972 = vmatprep.subr.mxu0 0.0
        %973 = vmatpush1.msra.mxu0 0.0
        %974 = vmatprep.mubr.f32.mxu0 0.0
        %975 = vmatmul.mubr.f32.gmra.mrb[0].mxu0 %v832
        %v976 = vpop.f32.mrb[0].mxu0
        %v977 = vadd.f32 0.0, %v976
        %v978 = vpop.f32.mrb[0].mxu0
        %v979 = vadd.f32 0.0, %v978
        %980 = vdwg.mxu0
        %v981 = vadd.f32 %v835, %v906
        %v982 = vadd.f32 %v836, %v908
        %v983 = vadd.f32 %v837, %v977
        %v984 = vadd.f32 %v838, %v979
        %v985 = vxor.u32 %v981, 2147483648
        %v986 = vmul.f32 %v985, 1.442695
        %v987 = vpow.pop %v986
        %v988 = vadd.f32 %v987, 1.0
        %v989 = vrcp.pop %v988
        %v990 = vmul.f32 1.0, %v989
        %v991 = vxor.u32 %v982, 2147483648
        %v992 = vmul.f32 %v991, 1.442695
        %v993 = vpow.pop %v992
        %v994 = vadd.f32 %v993, 1.0
        %v995 = vrcp.pop %v994
        %v996 = vmul.f32 1.0, %v995
        %v997 = vtanh.pop %v983
        %v998 = vxor.u32 %v984, 2147483648
        %v999 = vmul.f32 %v998, 1.442695
        %v1000 = vpow.pop %v999
        %v1001 = vadd.f32 %v1000, 1.0
        %v1002 = vrcp.pop %v1001
        %v1003 = vmul.f32 1.0, %v1002
        %v1004 = vmul.f32 %v996, %v833
        %v1005 = vmul.f32 %v990, %v997
        %v1006 = vadd.f32 %v1004, %v1005
        %v1007 = vtanh.pop %v1006
        %v1008 = vmul.f32 %v1003, %v1007
        %vm1009 = vcmp.gt.s32.totalorder %v285, 3
        %v1010 = vsel %vm1009, 1, 0
        %1011 = vset.pattern.permute.xlu0 0
        %1012 = vperm.xlu0 %1011, %v1010
        %v1013 = vpop.permute.xlu0 %1012
        %vm1014 = vcmp.eq.s32.totalorder %v1013, 1
        %v1015 = vsel %vm1014, %v1008, %v832
        %v1016 = vsel %vm1014, %v1006, %v833
        %s1017 = scalar_lea.vmem %s186, 128 [#allocation2]
        %v1018 = vld [vmem:[%s1017] sm:$0xff]
        %v1019 = vld [vmem:[%s1017 + $0x8] sm:$0xff]
        %v1020 = vld [vmem:[%s1017 + $0x10] sm:$0xff]
        %v1021 = vld [vmem:[%s1017 + $0x18] sm:$0xff]
        %1022 = vmatprep.subr.mxu0 %v222
        %1023 = vmatpush1.msra.mxu0 %v221
        %1024 = vmatprep.subr.mxu0 %v226
        %1025 = vmatpush1.msra.mxu0 %v225
        %1026 = vmatprep.subr.mxu0 %v230
        %1027 = vmatpush1.msra.mxu0 %v229
        %1028 = vmatprep.subr.mxu0 %v234
        %1029 = vmatpush1.msra.mxu0 %v233
        %1030 = vmatprep.subr.mxu0 %v238
        %1031 = vmatpush1.msra.mxu0 %v237
        %1032 = vmatprep.subr.mxu0 %v242
        %1033 = vmatpush1.msra.mxu0 %v241
        %1034 = vmatprep.subr.mxu0 %v246
        %1035 = vmatpush1.msra.mxu0 %v245
        %1036 = vmatprep.subr.mxu0 %v250
        %1037 = vmatpush1.msra.mxu0 %v249
        %1038 = vmatprep.subr.mxu0 %v254
        %1039 = vmatpush1.msra.mxu0 %v253
        %1040 = vmatprep.subr.mxu0 %v258
        %1041 = vmatpush1.msra.mxu0 %v257
        %1042 = vmatprep.subr.mxu0 %v262
        %1043 = vmatpush1.msra.mxu0 %v261
        %1044 = vmatprep.subr.mxu0 %v266
        %1045 = vmatpush1.msra.mxu0 %v265
        %1046 = vmatprep.subr.mxu0 %v270
        %1047 = vmatpush1.msra.mxu0 %v269
        %1048 = vmatprep.subr.mxu0 %v274
        %1049 = vmatpush1.msra.mxu0 %v273
        %1050 = vmatprep.subr.mxu0 %v278
        %1051 = vmatpush1.msra.mxu0 %v277
        %1052 = vmatprep.subr.mxu0 %v282
        %1053 = vmatpush1.msra.mxu0 %v281
        %1054 = vmatprep.subr.mxu0 0.0
        %1055 = vmatpush1.msra.mxu0 0.0
        %1056 = vmatprep.subr.mxu0 0.0
        %1057 = vmatpush1.msra.mxu0 0.0
        %1058 = vmatprep.subr.mxu0 0.0
        %1059 = vmatpush1.msra.mxu0 0.0
        %1060 = vmatprep.subr.mxu0 0.0
        %1061 = vmatpush1.msra.mxu0 0.0
        %1062 = vmatprep.subr.mxu0 0.0
        %1063 = vmatpush1.msra.mxu0 0.0
        %1064 = vmatprep.subr.mxu0 0.0
        %1065 = vmatpush1.msra.mxu0 0.0
        %1066 = vmatprep.subr.mxu0 0.0
        %1067 = vmatpush1.msra.mxu0 0.0
        %1068 = vmatprep.subr.mxu0 0.0
        %1069 = vmatpush1.msra.mxu0 0.0
        %1070 = vmatprep.subr.mxu0 0.0
        %1071 = vmatpush1.msra.mxu0 0.0
        %1072 = vmatprep.subr.mxu0 0.0
        %1073 = vmatpush1.msra.mxu0 0.0
        %1074 = vmatprep.subr.mxu0 0.0
        %1075 = vmatpush1.msra.mxu0 0.0
        %1076 = vmatprep.subr.mxu0 0.0
        %1077 = vmatpush1.msra.mxu0 0.0
        %1078 = vmatprep.subr.mxu0 0.0
        %1079 = vmatpush1.msra.mxu0 0.0
        %1080 = vmatprep.subr.mxu0 0.0
        %1081 = vmatpush1.msra.mxu0 0.0
        %1082 = vmatprep.subr.mxu0 0.0
        %1083 = vmatpush1.msra.mxu0 0.0
        %1084 = vmatprep.subr.mxu0 0.0
        %1085 = vmatpush1.msra.mxu0 0.0
        %1086 = vmatprep.mubr.f32.mxu0 0.0
        %1087 = vmatmul.mubr.f32.gmra.mrb[0].mxu0 %v1015
        %v1088 = vpop.f32.mrb[0].mxu0
        %v1089 = vadd.f32 0.0, %v1088
        %v1090 = vpop.f32.mrb[0].mxu0
        %v1091 = vadd.f32 0.0, %v1090
        %1092 = vdwg.mxu0
        %1093 = vmatprep.subr.mxu0 %v224
        %1094 = vmatpush1.msra.mxu0 %v223
        %1095 = vmatprep.subr.mxu0 %v228
        %1096 = vmatpush1.msra.mxu0 %v227
        %1097 = vmatprep.subr.mxu0 %v232
        %1098 = vmatpush1.msra.mxu0 %v231
        %1099 = vmatprep.subr.mxu0 %v236
        %1100 = vmatpush1.msra.mxu0 %v235
        %1101 = vmatprep.subr.mxu0 %v240
        %1102 = vmatpush1.msra.mxu0 %v239
        %1103 = vmatprep.subr.mxu0 %v244
        %1104 = vmatpush1.msra.mxu0 %v243
        %1105 = vmatprep.subr.mxu0 %v248
        %1106 = vmatpush1.msra.mxu0 %v247
        %1107 = vmatprep.subr.mxu0 %v252
        %1108 = vmatpush1.msra.mxu0 %v251
        %1109 = vmatprep.subr.mxu0 %v256
        %1110 = vmatpush1.msra.mxu0 %v255
        %1111 = vmatprep.subr.mxu0 %v260
        %1112 = vmatpush1.msra.mxu0 %v259
        %1113 = vmatprep.subr.mxu0 %v264
        %1114 = vmatpush1.msra.mxu0 %v263
        %1115 = vmatprep.subr.mxu0 %v268
        %1116 = vmatpush1.msra.mxu0 %v267
        %1117 = vmatprep.subr.mxu0 %v272
        %1118 = vmatpush1.msra.mxu0 %v271
        %1119 = vmatprep.subr.mxu0 %v276
        %1120 = vmatpush1.msra.mxu0 %v275
        %1121 = vmatprep.subr.mxu0 %v280
        %1122 = vmatpush1.msra.mxu0 %v279
        %1123 = vmatprep.subr.mxu0 %v284
        %1124 = vmatpush1.msra.mxu0 %v283
        %1125 = vmatprep.subr.mxu0 0.0
        %1126 = vmatpush1.msra.mxu0 0.0
        %1127 = vmatprep.subr.mxu0 0.0
        %1128 = vmatpush1.msra.mxu0 0.0
        %1129 = vmatprep.subr.mxu0 0.0
        %1130 = vmatpush1.msra.mxu0 0.0
        %1131 = vmatprep.subr.mxu0 0.0
        %1132 = vmatpush1.msra.mxu0 0.0
        %1133 = vmatprep.subr.mxu0 0.0
        %1134 = vmatpush1.msra.mxu0 0.0
        %1135 = vmatprep.subr.mxu0 0.0
        %1136 = vmatpush1.msra.mxu0 0.0
        %1137 = vmatprep.subr.mxu0 0.0
        %1138 = vmatpush1.msra.mxu0 0.0
        %1139 = vmatprep.subr.mxu0 0.0
        %1140 = vmatpush1.msra.mxu0 0.0
        %1141 = vmatprep.subr.mxu0 0.0
        %1142 = vmatpush1.msra.mxu0 0.0
        %1143 = vmatprep.subr.mxu0 0.0
        %1144 = vmatpush1.msra.mxu0 0.0
        %1145 = vmatprep.subr.mxu0 0.0
        %1146 = vmatpush1.msra.mxu0 0.0
        %1147 = vmatprep.subr.mxu0 0.0
        %1148 = vmatpush1.msra.mxu0 0.0
        %1149 = vmatprep.subr.mxu0 0.0
        %1150 = vmatpush1.msra.mxu0 0.0
        %1151 = vmatprep.subr.mxu0 0.0
        %1152 = vmatpush1.msra.mxu0 0.0
        %1153 = vmatprep.subr.mxu0 0.0
        %1154 = vmatpush1.msra.mxu0 0.0
        %1155 = vmatprep.subr.mxu0 0.0
        %1156 = vmatpush1.msra.mxu0 0.0
        %1157 = vmatprep.mubr.f32.mxu0 0.0
        %1158 = vmatmul.mubr.f32.gmra.mrb[0].mxu0 %v1015
        %v1159 = vpop.f32.mrb[0].mxu0
        %v1160 = vadd.f32 0.0, %v1159
        %v1161 = vpop.f32.mrb[0].mxu0
        %v1162 = vadd.f32 0.0, %v1161
        %1163 = vdwg.mxu0
        %v1164 = vadd.f32 %v1018, %v1089
        %v1165 = vadd.f32 %v1019, %v1091
        %v1166 = vadd.f32 %v1020, %v1160
        %v1167 = vadd.f32 %v1021, %v1162
        %v1168 = vxor.u32 %v1164, 2147483648
        %v1169 = vmul.f32 %v1168, 1.442695
        %v1170 = vpow.pop %v1169
        %v1171 = vadd.f32 %v1170, 1.0
        %v1172 = vrcp.pop %v1171
        %v1173 = vmul.f32 1.0, %v1172
        %v1174 = vxor.u32 %v1165, 2147483648
        %v1175 = vmul.f32 %v1174, 1.442695
        %v1176 = vpow.pop %v1175
        %v1177 = vadd.f32 %v1176, 1.0
        %v1178 = vrcp.pop %v1177
        %v1179 = vmul.f32 1.0, %v1178
        %v1180 = vtanh.pop %v1166
        %v1181 = vxor.u32 %v1167, 2147483648
        %v1182 = vmul.f32 %v1181, 1.442695
        %v1183 = vpow.pop %v1182
        %v1184 = vadd.f32 %v1183, 1.0
        %v1185 = vrcp.pop %v1184
        %v1186 = vmul.f32 1.0, %v1185
        %v1187 = vmul.f32 %v1179, %v1016
        %v1188 = vmul.f32 %v1173, %v1180
        %v1189 = vadd.f32 %v1187, %v1188
        %v1190 = vtanh.pop %v1189
        %v1191 = vmul.f32 %v1186, %v1190
        %vm1192 = vcmp.gt.s32.totalorder %v285, 4
        %v1193 = vsel %vm1192, 1, 0
        %1194 = vset.pattern.permute.xlu0 0
        %1195 = vperm.xlu0 %1194, %v1193
        %v1196 = vpop.permute.xlu0 %1195
        %vm1197 = vcmp.eq.s32.totalorder %v1196, 1
        %v1198 = vsel %vm1197, %v1191, %v1015
        %v1199 = vsel %vm1197, %v1189, %v1016
        %s1200 = scalar_lea.vmem %s186, 160 [#allocation2]
        %v1201 = vld [vmem:[%s1200] sm:$0xff]
        %v1202 = vld [vmem:[%s1200 + $0x8] sm:$0xff]
        %v1203 = vld [vmem:[%s1200 + $0x10] sm:$0xff]
        %v1204 = vld [vmem:[%s1200 + $0x18] sm:$0xff]
        %1205 = vmatprep.subr.mxu0 %v222
        %1206 = vmatpush1.msra.mxu0 %v221
        %1207 = vmatprep.subr.mxu0 %v226
        %1208 = vmatpush1.msra.mxu0 %v225
        %1209 = vmatprep.subr.mxu0 %v230
        %1210 = vmatpush1.msra.mxu0 %v229
        %1211 = vmatprep.subr.mxu0 %v234
        %1212 = vmatpush1.msra.mxu0 %v233
        %1213 = vmatprep.subr.mxu0 %v238
        %1214 = vmatpush1.msra.mxu0 %v237
        %1215 = vmatprep.subr.mxu0 %v242
        %1216 = vmatpush1.msra.mxu0 %v241
        %1217 = vmatprep.subr.mxu0 %v246
        %1218 = vmatpush1.msra.mxu0 %v245
        %1219 = vmatprep.subr.mxu0 %v250
        %1220 = vmatpush1.msra.mxu0 %v249
        %1221 = vmatprep.subr.mxu0 %v254
        %1222 = vmatpush1.msra.mxu0 %v253
        %1223 = vmatprep.subr.mxu0 %v258
        %1224 = vmatpush1.msra.mxu0 %v257
        %1225 = vmatprep.subr.mxu0 %v262
        %1226 = vmatpush1.msra.mxu0 %v261
        %1227 = vmatprep.subr.mxu0 %v266
        %1228 = vmatpush1.msra.mxu0 %v265
        %1229 = vmatprep.subr.mxu0 %v270
        %1230 = vmatpush1.msra.mxu0 %v269
        %1231 = vmatprep.subr.mxu0 %v274
        %1232 = vmatpush1.msra.mxu0 %v273
        %1233 = vmatprep.subr.mxu0 %v278
        %1234 = vmatpush1.msra.mxu0 %v277
        %1235 = vmatprep.subr.mxu0 %v282
        %1236 = vmatpush1.msra.mxu0 %v281
        %1237 = vmatprep.subr.mxu0 0.0
        %1238 = vmatpush1.msra.mxu0 0.0
        %1239 = vmatprep.subr.mxu0 0.0
        %1240 = vmatpush1.msra.mxu0 0.0
        %1241 = vmatprep.subr.mxu0 0.0
        %1242 = vmatpush1.msra.mxu0 0.0
        %1243 = vmatprep.subr.mxu0 0.0
        %1244 = vmatpush1.msra.mxu0 0.0
        %1245 = vmatprep.subr.mxu0 0.0
        %1246 = vmatpush1.msra.mxu0 0.0
        %1247 = vmatprep.subr.mxu0 0.0
        %1248 = vmatpush1.msra.mxu0 0.0
        %1249 = vmatprep.subr.mxu0 0.0
        %1250 = vmatpush1.msra.mxu0 0.0
        %1251 = vmatprep.subr.mxu0 0.0
        %1252 = vmatpush1.msra.mxu0 0.0
        %1253 = vmatprep.subr.mxu0 0.0
        %1254 = vmatpush1.msra.mxu0 0.0
        %1255 = vmatprep.subr.mxu0 0.0
        %1256 = vmatpush1.msra.mxu0 0.0
        %1257 = vmatprep.subr.mxu0 0.0
        %1258 = vmatpush1.msra.mxu0 0.0
        %1259 = vmatprep.subr.mxu0 0.0
        %1260 = vmatpush1.msra.mxu0 0.0
        %1261 = vmatprep.subr.mxu0 0.0
        %1262 = vmatpush1.msra.mxu0 0.0
        %1263 = vmatprep.subr.mxu0 0.0
        %1264 = vmatpush1.msra.mxu0 0.0
        %1265 = vmatprep.subr.mxu0 0.0
        %1266 = vmatpush1.msra.mxu0 0.0
        %1267 = vmatprep.subr.mxu0 0.0
        %1268 = vmatpush1.msra.mxu0 0.0
        %1269 = vmatprep.mubr.f32.mxu0 0.0
        %1270 = vmatmul.mubr.f32.gmra.mrb[0].mxu0 %v1198
        %v1271 = vpop.f32.mrb[0].mxu0
        %v1272 = vadd.f32 0.0, %v1271
        %v1273 = vpop.f32.mrb[0].mxu0
        %v1274 = vadd.f32 0.0, %v1273
        %1275 = vdwg.mxu0
        %1276 = vmatprep.subr.mxu0 %v224
        %1277 = vmatpush1.msra.mxu0 %v223
        %1278 = vmatprep.subr.mxu0 %v228
        %1279 = vmatpush1.msra.mxu0 %v227
        %1280 = vmatprep.subr.mxu0 %v232
        %1281 = vmatpush1.msra.mxu0 %v231
        %1282 = vmatprep.subr.mxu0 %v236
        %1283 = vmatpush1.msra.mxu0 %v235
        %1284 = vmatprep.subr.mxu0 %v240
        %1285 = vmatpush1.msra.mxu0 %v239
        %1286 = vmatprep.subr.mxu0 %v244
        %1287 = vmatpush1.msra.mxu0 %v243
        %1288 = vmatprep.subr.mxu0 %v248
        %1289 = vmatpush1.msra.mxu0 %v247
        %1290 = vmatprep.subr.mxu0 %v252
        %1291 = vmatpush1.msra.mxu0 %v251
        %1292 = vmatprep.subr.mxu0 %v256
        %1293 = vmatpush1.msra.mxu0 %v255
        %1294 = vmatprep.subr.mxu0 %v260
        %1295 = vmatpush1.msra.mxu0 %v259
        %1296 = vmatprep.subr.mxu0 %v264
        %1297 = vmatpush1.msra.mxu0 %v263
        %1298 = vmatprep.subr.mxu0 %v268
        %1299 = vmatpush1.msra.mxu0 %v267
        %1300 = vmatprep.subr.mxu0 %v272
        %1301 = vmatpush1.msra.mxu0 %v271
        %1302 = vmatprep.subr.mxu0 %v276
        %1303 = vmatpush1.msra.mxu0 %v275
        %1304 = vmatprep.subr.mxu0 %v280
        %1305 = vmatpush1.msra.mxu0 %v279
        %1306 = vmatprep.subr.mxu0 %v284
        %1307 = vmatpush1.msra.mxu0 %v283
        %1308 = vmatprep.subr.mxu0 0.0
        %1309 = vmatpush1.msra.mxu0 0.0
        %1310 = vmatprep.subr.mxu0 0.0
        %1311 = vmatpush1.msra.mxu0 0.0
        %1312 = vmatprep.subr.mxu0 0.0
        %1313 = vmatpush1.msra.mxu0 0.0
        %1314 = vmatprep.subr.mxu0 0.0
        %1315 = vmatpush1.msra.mxu0 0.0
        %1316 = vmatprep.subr.mxu0 0.0
        %1317 = vmatpush1.msra.mxu0 0.0
        %1318 = vmatprep.subr.mxu0 0.0
        %1319 = vmatpush1.msra.mxu0 0.0
        %1320 = vmatprep.subr.mxu0 0.0
        %1321 = vmatpush1.msra.mxu0 0.0
        %1322 = vmatprep.subr.mxu0 0.0
        %1323 = vmatpush1.msra.mxu0 0.0
        %1324 = vmatprep.subr.mxu0 0.0
        %1325 = vmatpush1.msra.mxu0 0.0
        %1326 = vmatprep.subr.mxu0 0.0
        %1327 = vmatpush1.msra.mxu0 0.0
        %1328 = vmatprep.subr.mxu0 0.0
        %1329 = vmatpush1.msra.mxu0 0.0
        %1330 = vmatprep.subr.mxu0 0.0
        %1331 = vmatpush1.msra.mxu0 0.0
        %1332 = vmatprep.subr.mxu0 0.0
        %1333 = vmatpush1.msra.mxu0 0.0
        %1334 = vmatprep.subr.mxu0 0.0
        %1335 = vmatpush1.msra.mxu0 0.0
        %1336 = vmatprep.subr.mxu0 0.0
        %1337 = vmatpush1.msra.mxu0 0.0
        %1338 = vmatprep.subr.mxu0 0.0
        %1339 = vmatpush1.msra.mxu0 0.0
        %1340 = vmatprep.mubr.f32.mxu0 0.0
        %1341 = vmatmul.mubr.f32.gmra.mrb[0].mxu0 %v1198
        %v1342 = vpop.f32.mrb[0].mxu0
        %v1343 = vadd.f32 0.0, %v1342
        %v1344 = vpop.f32.mrb[0].mxu0
        %v1345 = vadd.f32 0.0, %v1344
        %1346 = vdwg.mxu0
        %v1347 = vadd.f32 %v1201, %v1272
        %v1348 = vadd.f32 %v1202, %v1274
        %v1349 = vadd.f32 %v1203, %v1343
        %v1350 = vadd.f32 %v1204, %v1345
        %v1351 = vxor.u32 %v1347, 2147483648
        %v1352 = vmul.f32 %v1351, 1.442695
        %v1353 = vpow.pop %v1352
        %v1354 = vadd.f32 %v1353, 1.0
        %v1355 = vrcp.pop %v1354
        %v1356 = vmul.f32 1.0, %v1355
        %v1357 = vxor.u32 %v1348, 2147483648
        %v1358 = vmul.f32 %v1357, 1.442695
        %v1359 = vpow.pop %v1358
        %v1360 = vadd.f32 %v1359, 1.0
        %v1361 = vrcp.pop %v1360
        %v1362 = vmul.f32 1.0, %v1361
        %v1363 = vtanh.pop %v1349
        %v1364 = vxor.u32 %v1350, 2147483648
        %v1365 = vmul.f32 %v1364, 1.442695
        %v1366 = vpow.pop %v1365
        %v1367 = vadd.f32 %v1366, 1.0
        %v1368 = vrcp.pop %v1367
        %v1369 = vmul.f32 1.0, %v1368
        %v1370 = vmul.f32 %v1362, %v1199
        %v1371 = vmul.f32 %v1356, %v1363
        %v1372 = vadd.f32 %v1370, %v1371
        %v1373 = vtanh.pop %v1372
        %v1374 = vmul.f32 %v1369, %v1373
        %vm1375 = vcmp.gt.s32.totalorder %v285, 5
        %v1376 = vsel %vm1375, 1, 0
        %1377 = vset.pattern.permute.xlu0 0
        %1378 = vperm.xlu0 %1377, %v1376
        %v1379 = vpop.permute.xlu0 %1378
        %vm1380 = vcmp.eq.s32.totalorder %v1379, 1
        %v1381 = vsel %vm1380, %v1374, %v1198
        %v1382 = vsel %vm1380, %v1372, %v1199
        %s1383 = scalar_lea.vmem %s186, 192 [#allocation2]
        %v1384 = vld [vmem:[%s1383] sm:$0xff]
        %v1385 = vld [vmem:[%s1383 + $0x8] sm:$0xff]
        %v1386 = vld [vmem:[%s1383 + $0x10] sm:$0xff]
        %v1387 = vld [vmem:[%s1383 + $0x18] sm:$0xff]
        %1388 = vmatprep.subr.mxu0 %v222
        %1389 = vmatpush1.msra.mxu0 %v221
        %1390 = vmatprep.subr.mxu0 %v226
        %1391 = vmatpush1.msra.mxu0 %v225
        %1392 = vmatprep.subr.mxu0 %v230
        %1393 = vmatpush1.msra.mxu0 %v229
        %1394 = vmatprep.subr.mxu0 %v234
        %1395 = vmatpush1.msra.mxu0 %v233
        %1396 = vmatprep.subr.mxu0 %v238
        %1397 = vmatpush1.msra.mxu0 %v237
        %1398 = vmatprep.subr.mxu0 %v242
        %1399 = vmatpush1.msra.mxu0 %v241
        %1400 = vmatprep.subr.mxu0 %v246
        %1401 = vmatpush1.msra.mxu0 %v245
        %1402 = vmatprep.subr.mxu0 %v250
        %1403 = vmatpush1.msra.mxu0 %v249
        %1404 = vmatprep.subr.mxu0 %v254
        %1405 = vmatpush1.msra.mxu0 %v253
        %1406 = vmatprep.subr.mxu0 %v258
        %1407 = vmatpush1.msra.mxu0 %v257
        %1408 = vmatprep.subr.mxu0 %v262
        %1409 = vmatpush1.msra.mxu0 %v261
        %1410 = vmatprep.subr.mxu0 %v266
        %1411 = vmatpush1.msra.mxu0 %v265
        %1412 = vmatprep.subr.mxu0 %v270
        %1413 = vmatpush1.msra.mxu0 %v269
        %1414 = vmatprep.subr.mxu0 %v274
        %1415 = vmatpush1.msra.mxu0 %v273
        %1416 = vmatprep.subr.mxu0 %v278
        %1417 = vmatpush1.msra.mxu0 %v277
        %1418 = vmatprep.subr.mxu0 %v282
        %1419 = vmatpush1.msra.mxu0 %v281
        %1420 = vmatprep.subr.mxu0 0.0
        %1421 = vmatpush1.msra.mxu0 0.0
        %1422 = vmatprep.subr.mxu0 0.0
        %1423 = vmatpush1.msra.mxu0 0.0
        %1424 = vmatprep.subr.mxu0 0.0
        %1425 = vmatpush1.msra.mxu0 0.0
        %1426 = vmatprep.subr.mxu0 0.0
        %1427 = vmatpush1.msra.mxu0 0.0
        %1428 = vmatprep.subr.mxu0 0.0
        %1429 = vmatpush1.msra.mxu0 0.0
        %1430 = vmatprep.subr.mxu0 0.0
        %1431 = vmatpush1.msra.mxu0 0.0
        %1432 = vmatprep.subr.mxu0 0.0
        %1433 = vmatpush1.msra.mxu0 0.0
        %1434 = vmatprep.subr.mxu0 0.0
        %1435 = vmatpush1.msra.mxu0 0.0
        %1436 = vmatprep.subr.mxu0 0.0
        %1437 = vmatpush1.msra.mxu0 0.0
        %1438 = vmatprep.subr.mxu0 0.0
        %1439 = vmatpush1.msra.mxu0 0.0
        %1440 = vmatprep.subr.mxu0 0.0
        %1441 = vmatpush1.msra.mxu0 0.0
        %1442 = vmatprep.subr.mxu0 0.0
        %1443 = vmatpush1.msra.mxu0 0.0
        %1444 = vmatprep.subr.mxu0 0.0
        %1445 = vmatpush1.msra.mxu0 0.0
        %1446 = vmatprep.subr.mxu0 0.0
        %1447 = vmatpush1.msra.mxu0 0.0
        %1448 = vmatprep.subr.mxu0 0.0
        %1449 = vmatpush1.msra.mxu0 0.0
        %1450 = vmatprep.subr.mxu0 0.0
        %1451 = vmatpush1.msra.mxu0 0.0
        %1452 = vmatprep.mubr.f32.mxu0 0.0
        %1453 = vmatmul.mubr.f32.gmra.mrb[0].mxu0 %v1381
        %v1454 = vpop.f32.mrb[0].mxu0
        %v1455 = vadd.f32 0.0, %v1454
        %v1456 = vpop.f32.mrb[0].mxu0
        %v1457 = vadd.f32 0.0, %v1456
        %1458 = vdwg.mxu0
        %1459 = vmatprep.subr.mxu0 %v224
        %1460 = vmatpush1.msra.mxu0 %v223
        %1461 = vmatprep.subr.mxu0 %v228
        %1462 = vmatpush1.msra.mxu0 %v227
        %1463 = vmatprep.subr.mxu0 %v232
        %1464 = vmatpush1.msra.mxu0 %v231
        %1465 = vmatprep.subr.mxu0 %v236
        %1466 = vmatpush1.msra.mxu0 %v235
        %1467 = vmatprep.subr.mxu0 %v240
        %1468 = vmatpush1.msra.mxu0 %v239
        %1469 = vmatprep.subr.mxu0 %v244
        %1470 = vmatpush1.msra.mxu0 %v243
        %1471 = vmatprep.subr.mxu0 %v248
        %1472 = vmatpush1.msra.mxu0 %v247
        %1473 = vmatprep.subr.mxu0 %v252
        %1474 = vmatpush1.msra.mxu0 %v251
        %1475 = vmatprep.subr.mxu0 %v256
        %1476 = vmatpush1.msra.mxu0 %v255
        %1477 = vmatprep.subr.mxu0 %v260
        %1478 = vmatpush1.msra.mxu0 %v259
        %1479 = vmatprep.subr.mxu0 %v264
        %1480 = vmatpush1.msra.mxu0 %v263
        %1481 = vmatprep.subr.mxu0 %v268
        %1482 = vmatpush1.msra.mxu0 %v267
        %1483 = vmatprep.subr.mxu0 %v272
        %1484 = vmatpush1.msra.mxu0 %v271
        %1485 = vmatprep.subr.mxu0 %v276
        %1486 = vmatpush1.msra.mxu0 %v275
        %1487 = vmatprep.subr.mxu0 %v280
        %1488 = vmatpush1.msra.mxu0 %v279
        %1489 = vmatprep.subr.mxu0 %v284
        %1490 = vmatpush1.msra.mxu0 %v283
        %1491 = vmatprep.subr.mxu0 0.0
        %1492 = vmatpush1.msra.mxu0 0.0
        %1493 = vmatprep.subr.mxu0 0.0
        %1494 = vmatpush1.msra.mxu0 0.0
        %1495 = vmatprep.subr.mxu0 0.0
        %1496 = vmatpush1.msra.mxu0 0.0
        %1497 = vmatprep.subr.mxu0 0.0
        %1498 = vmatpush1.msra.mxu0 0.0
        %1499 = vmatprep.subr.mxu0 0.0
        %1500 = vmatpush1.msra.mxu0 0.0
        %1501 = vmatprep.subr.mxu0 0.0
        %1502 = vmatpush1.msra.mxu0 0.0
        %1503 = vmatprep.subr.mxu0 0.0
        %1504 = vmatpush1.msra.mxu0 0.0
        %1505 = vmatprep.subr.mxu0 0.0
        %1506 = vmatpush1.msra.mxu0 0.0
        %1507 = vmatprep.subr.mxu0 0.0
        %1508 = vmatpush1.msra.mxu0 0.0
        %1509 = vmatprep.subr.mxu0 0.0
        %1510 = vmatpush1.msra.mxu0 0.0
        %1511 = vmatprep.subr.mxu0 0.0
        %1512 = vmatpush1.msra.mxu0 0.0
        %1513 = vmatprep.subr.mxu0 0.0
        %1514 = vmatpush1.msra.mxu0 0.0
        %1515 = vmatprep.subr.mxu0 0.0
        %1516 = vmatpush1.msra.mxu0 0.0
        %1517 = vmatprep.subr.mxu0 0.0
        %1518 = vmatpush1.msra.mxu0 0.0
        %1519 = vmatprep.subr.mxu0 0.0
        %1520 = vmatpush1.msra.mxu0 0.0
        %1521 = vmatprep.subr.mxu0 0.0
        %1522 = vmatpush1.msra.mxu0 0.0
        %1523 = vmatprep.mubr.f32.mxu0 0.0
        %1524 = vmatmul.mubr.f32.gmra.mrb[0].mxu0 %v1381
        %v1525 = vpop.f32.mrb[0].mxu0
        %v1526 = vadd.f32 0.0, %v1525
        %v1527 = vpop.f32.mrb[0].mxu0
        %v1528 = vadd.f32 0.0, %v1527
        %1529 = vdwg.mxu0
        %v1530 = vadd.f32 %v1384, %v1455
        %v1531 = vadd.f32 %v1385, %v1457
        %v1532 = vadd.f32 %v1386, %v1526
        %v1533 = vadd.f32 %v1387, %v1528
        %v1534 = vxor.u32 %v1530, 2147483648
        %v1535 = vmul.f32 %v1534, 1.442695
        %v1536 = vpow.pop %v1535
        %v1537 = vadd.f32 %v1536, 1.0
        %v1538 = vrcp.pop %v1537
        %v1539 = vmul.f32 1.0, %v1538
        %v1540 = vxor.u32 %v1531, 2147483648
        %v1541 = vmul.f32 %v1540, 1.442695
        %v1542 = vpow.pop %v1541
        %v1543 = vadd.f32 %v1542, 1.0
        %v1544 = vrcp.pop %v1543
        %v1545 = vmul.f32 1.0, %v1544
        %v1546 = vtanh.pop %v1532
        %v1547 = vxor.u32 %v1533, 2147483648
        %v1548 = vmul.f32 %v1547, 1.442695
        %v1549 = vpow.pop %v1548
        %v1550 = vadd.f32 %v1549, 1.0
        %v1551 = vrcp.pop %v1550
        %v1552 = vmul.f32 1.0, %v1551
        %v1553 = vmul.f32 %v1545, %v1382
        %v1554 = vmul.f32 %v1539, %v1546
        %v1555 = vadd.f32 %v1553, %v1554
        %v1556 = vtanh.pop %v1555
        %v1557 = vmul.f32 %v1552, %v1556
        %vm1558 = vcmp.gt.s32.totalorder %v285, 6
        %v1559 = vsel %vm1558, 1, 0
        %1560 = vset.pattern.permute.xlu0 0
        %1561 = vperm.xlu0 %1560, %v1559
        %v1562 = vpop.permute.xlu0 %1561
        %vm1563 = vcmp.eq.s32.totalorder %v1562, 1
        %v1564 = vsel %vm1563, %v1557, %v1381
        %v1565 = vsel %vm1563, %v1555, %v1382
        %s1566 = scalar_lea.vmem %s186, 224 [#allocation2]
        %v1567 = vld [vmem:[%s1566] sm:$0xff]
        %v1568 = vld [vmem:[%s1566 + $0x8] sm:$0xff]
        %v1569 = vld [vmem:[%s1566 + $0x10] sm:$0xff]
        %v1570 = vld [vmem:[%s1566 + $0x18] sm:$0xff]
        %1571 = vmatprep.subr.mxu0 %v222
        %1572 = vmatpush1.msra.mxu0 %v221
        %1573 = vmatprep.subr.mxu0 %v226
        %1574 = vmatpush1.msra.mxu0 %v225
        %1575 = vmatprep.subr.mxu0 %v230
        %1576 = vmatpush1.msra.mxu0 %v229
        %1577 = vmatprep.subr.mxu0 %v234
        %1578 = vmatpush1.msra.mxu0 %v233
        %1579 = vmatprep.subr.mxu0 %v238
        %1580 = vmatpush1.msra.mxu0 %v237
        %1581 = vmatprep.subr.mxu0 %v242
        %1582 = vmatpush1.msra.mxu0 %v241
        %1583 = vmatprep.subr.mxu0 %v246
        %1584 = vmatpush1.msra.mxu0 %v245
        %1585 = vmatprep.subr.mxu0 %v250
        %1586 = vmatpush1.msra.mxu0 %v249
        %1587 = vmatprep.subr.mxu0 %v254
        %1588 = vmatpush1.msra.mxu0 %v253
        %1589 = vmatprep.subr.mxu0 %v258
        %1590 = vmatpush1.msra.mxu0 %v257
        %1591 = vmatprep.subr.mxu0 %v262
        %1592 = vmatpush1.msra.mxu0 %v261
        %1593 = vmatprep.subr.mxu0 %v266
        %1594 = vmatpush1.msra.mxu0 %v265
        %1595 = vmatprep.subr.mxu0 %v270
        %1596 = vmatpush1.msra.mxu0 %v269
        %1597 = vmatprep.subr.mxu0 %v274
        %1598 = vmatpush1.msra.mxu0 %v273
        %1599 = vmatprep.subr.mxu0 %v278
        %1600 = vmatpush1.msra.mxu0 %v277
        %1601 = vmatprep.subr.mxu0 %v282
        %1602 = vmatpush1.msra.mxu0 %v281
        %1603 = vmatprep.subr.mxu0 0.0
        %1604 = vmatpush1.msra.mxu0 0.0
        %1605 = vmatprep.subr.mxu0 0.0
        %1606 = vmatpush1.msra.mxu0 0.0
        %1607 = vmatprep.subr.mxu0 0.0
        %1608 = vmatpush1.msra.mxu0 0.0
        %1609 = vmatprep.subr.mxu0 0.0
        %1610 = vmatpush1.msra.mxu0 0.0
        %1611 = vmatprep.subr.mxu0 0.0
        %1612 = vmatpush1.msra.mxu0 0.0
        %1613 = vmatprep.subr.mxu0 0.0
        %1614 = vmatpush1.msra.mxu0 0.0
        %1615 = vmatprep.subr.mxu0 0.0
        %1616 = vmatpush1.msra.mxu0 0.0
        %1617 = vmatprep.subr.mxu0 0.0
        %1618 = vmatpush1.msra.mxu0 0.0
        %1619 = vmatprep.subr.mxu0 0.0
        %1620 = vmatpush1.msra.mxu0 0.0
        %1621 = vmatprep.subr.mxu0 0.0
        %1622 = vmatpush1.msra.mxu0 0.0
        %1623 = vmatprep.subr.mxu0 0.0
        %1624 = vmatpush1.msra.mxu0 0.0
        %1625 = vmatprep.subr.mxu0 0.0
        %1626 = vmatpush1.msra.mxu0 0.0
        %1627 = vmatprep.subr.mxu0 0.0
        %1628 = vmatpush1.msra.mxu0 0.0
        %1629 = vmatprep.subr.mxu0 0.0
        %1630 = vmatpush1.msra.mxu0 0.0
        %1631 = vmatprep.subr.mxu0 0.0
        %1632 = vmatpush1.msra.mxu0 0.0
        %1633 = vmatprep.subr.mxu0 0.0
        %1634 = vmatpush1.msra.mxu0 0.0
        %1635 = vmatprep.mubr.f32.mxu0 0.0
        %1636 = vmatmul.mubr.f32.gmra.mrb[0].mxu0 %v1564
        %v1637 = vpop.f32.mrb[0].mxu0
        %v1638 = vadd.f32 0.0, %v1637
        %v1639 = vpop.f32.mrb[0].mxu0
        %v1640 = vadd.f32 0.0, %v1639
        %1641 = vdwg.mxu0
        %1642 = vmatprep.subr.mxu0 %v224
        %1643 = vmatpush1.msra.mxu0 %v223
        %1644 = vmatprep.subr.mxu0 %v228
        %1645 = vmatpush1.msra.mxu0 %v227
        %1646 = vmatprep.subr.mxu0 %v232
        %1647 = vmatpush1.msra.mxu0 %v231
        %1648 = vmatprep.subr.mxu0 %v236
        %1649 = vmatpush1.msra.mxu0 %v235
        %1650 = vmatprep.subr.mxu0 %v240
        %1651 = vmatpush1.msra.mxu0 %v239
        %1652 = vmatprep.subr.mxu0 %v244
        %1653 = vmatpush1.msra.mxu0 %v243
        %1654 = vmatprep.subr.mxu0 %v248
        %1655 = vmatpush1.msra.mxu0 %v247
        %1656 = vmatprep.subr.mxu0 %v252
        %1657 = vmatpush1.msra.mxu0 %v251
        %1658 = vmatprep.subr.mxu0 %v256
        %1659 = vmatpush1.msra.mxu0 %v255
        %1660 = vmatprep.subr.mxu0 %v260
        %1661 = vmatpush1.msra.mxu0 %v259
        %1662 = vmatprep.subr.mxu0 %v264
        %1663 = vmatpush1.msra.mxu0 %v263
        %1664 = vmatprep.subr.mxu0 %v268
        %1665 = vmatpush1.msra.mxu0 %v267
        %1666 = vmatprep.subr.mxu0 %v272
        %1667 = vmatpush1.msra.mxu0 %v271
        %1668 = vmatprep.subr.mxu0 %v276
        %1669 = vmatpush1.msra.mxu0 %v275
        %1670 = vmatprep.subr.mxu0 %v280
        %1671 = vmatpush1.msra.mxu0 %v279
        %1672 = vmatprep.subr.mxu0 %v284
        %1673 = vmatpush1.msra.mxu0 %v283
        %1674 = vmatprep.subr.mxu0 0.0
        %1675 = vmatpush1.msra.mxu0 0.0
        %1676 = vmatprep.subr.mxu0 0.0
        %1677 = vmatpush1.msra.mxu0 0.0
        %1678 = vmatprep.subr.mxu0 0.0
        %1679 = vmatpush1.msra.mxu0 0.0
        %1680 = vmatprep.subr.mxu0 0.0
        %1681 = vmatpush1.msra.mxu0 0.0
        %1682 = vmatprep.subr.mxu0 0.0
        %1683 = vmatpush1.msra.mxu0 0.0
        %1684 = vmatprep.subr.mxu0 0.0
        %1685 = vmatpush1.msra.mxu0 0.0
        %1686 = vmatprep.subr.mxu0 0.0
        %1687 = vmatpush1.msra.mxu0 0.0
        %1688 = vmatprep.subr.mxu0 0.0
        %1689 = vmatpush1.msra.mxu0 0.0
        %1690 = vmatprep.subr.mxu0 0.0
        %1691 = vmatpush1.msra.mxu0 0.0
        %1692 = vmatprep.subr.mxu0 0.0
        %1693 = vmatpush1.msra.mxu0 0.0
        %1694 = vmatprep.subr.mxu0 0.0
        %1695 = vmatpush1.msra.mxu0 0.0
        %1696 = vmatprep.subr.mxu0 0.0
        %1697 = vmatpush1.msra.mxu0 0.0
        %1698 = vmatprep.subr.mxu0 0.0
        %1699 = vmatpush1.msra.mxu0 0.0
        %1700 = vmatprep.subr.mxu0 0.0
        %1701 = vmatpush1.msra.mxu0 0.0
        %1702 = vmatprep.subr.mxu0 0.0
        %1703 = vmatpush1.msra.mxu0 0.0
        %1704 = vmatprep.subr.mxu0 0.0
        %1705 = vmatpush1.msra.mxu0 0.0
        %1706 = vmatprep.mubr.f32.mxu0 0.0
        %1707 = vmatmul.mubr.f32.gmra.mrb[0].mxu0 %v1564
        %v1708 = vpop.f32.mrb[0].mxu0
        %v1709 = vadd.f32 0.0, %v1708
        %v1710 = vpop.f32.mrb[0].mxu0
        %v1711 = vadd.f32 0.0, %v1710
        %1712 = vdwg.mxu0
        %v1713 = vadd.f32 %v1567, %v1638
        %v1714 = vadd.f32 %v1568, %v1640
        %v1715 = vadd.f32 %v1569, %v1709
        %v1716 = vadd.f32 %v1570, %v1711
        %v1717 = vxor.u32 %v1713, 2147483648
        %v1718 = vmul.f32 %v1717, 1.442695
        %v1719 = vpow.pop %v1718
        %v1720 = vadd.f32 %v1719, 1.0
        %v1721 = vrcp.pop %v1720
        %v1722 = vmul.f32 1.0, %v1721
        %v1723 = vxor.u32 %v1714, 2147483648
        %v1724 = vmul.f32 %v1723, 1.442695
        %v1725 = vpow.pop %v1724
        %v1726 = vadd.f32 %v1725, 1.0
        %v1727 = vrcp.pop %v1726
        %v1728 = vmul.f32 1.0, %v1727
        %v1729 = vtanh.pop %v1715
        %v1730 = vxor.u32 %v1716, 2147483648
        %v1731 = vmul.f32 %v1730, 1.442695
        %v1732 = vpow.pop %v1731
        %v1733 = vadd.f32 %v1732, 1.0
        %v1734 = vrcp.pop %v1733
        %v1735 = vmul.f32 1.0, %v1734
        %v1736 = vmul.f32 %v1728, %v1565
        %v1737 = vmul.f32 %v1722, %v1729
        %v1738 = vadd.f32 %v1736, %v1737
        %v1739 = vtanh.pop %v1738
        %v1740 = vmul.f32 %v1735, %v1739
        %vm1741 = vcmp.gt.s32.totalorder %v285, 7
        %v1742 = vsel %vm1741, 1, 0
        %1743 = vset.pattern.permute.xlu0 0
        %1744 = vperm.xlu0 %1743, %v1742
        %v1745 = vpop.permute.xlu0 %1744
        %vm1746 = vcmp.eq.s32.totalorder %v1745, 1
        %v1747 = vsel %vm1746, %v1740, %v1564
        %1748 = vst [vmem:[%s216] sm:$0xff] %v1747
        %s1749 = sand.u32 %s102, 1
        %s1750 = scalar_lea.sflag [#allocation4], %s1749
        %s1751 = sand.u32 %s102, 1
        %s1752 = smul.addr %s1751, 8
        %s1753 = scalar_lea.vmem [#allocation7], %s1752
        // Predicated region
        $region41: #{tpu_custom_call.1} parent=31 // pred_check
          %p1754 = pneg %p112
        $region42: #{tpu_custom_call.1} parent=31 // pred_check_branch
          %1756 = sbr.rel (%p1754) target = $region44
        $region43: #{tpu_custom_call.1} parent=31 // pred_region
          %s1758 = ssub.s32 128, 128
          %1759 = vsyncadd %s1750, %s1758
          %s1760 = smul.addr %s21, 128
          %s1761 = scalar_lea.hbm %s3, %s1760
          %s1763 = sshll.u32 %s1753, 4
          %s1764 = int_to_ptr.vmem [resolvable:$true] %s1763
          %1766 = dma.vmem_to_hbm [thread:$0]  %s1764, 128, %s1761, %s1750
        $region44: #{tpu_custom_call.1} parent=31 // pred_fallthru
          _
      $region32: #{tpu_custom_call.1} parent=5 // pred_fallthru
        _
      %p1767 = scmp.le.s32.totalorder 2, %s16
      // Predicated region
      $region45: #{tpu_custom_call.1} parent=5 // pred_check
        %p1768 = pneg %p1767
      $region46: #{tpu_custom_call.1} parent=5 // pred_check_branch
        %1770 = sbr.rel (%p1768) target = $region48
      $region47: #{tpu_custom_call.1} parent=5 // pred_region
        %s1771 = ssub.s32 %s16, 2
        // Predicated region
        $region49: #{tpu_custom_call.1} parent=47 // pred_check
          %p1772 = pneg %p118
        $region50: #{tpu_custom_call.1} parent=47 // pred_check_branch
          %1774 = sbr.rel (%p1772) target = $region52
        $region51: #{tpu_custom_call.1} parent=47 // pred_region
          %s1775 = sand.u32 %s103, 1
          %s1776 = scalar_lea.sflag [#allocation4], %s1775
          %s1777 = sand.u32 %s103, 1
          %s1778 = smul.addr %s1777, 8
          %s1779 = scalar_lea.vmem [#allocation7], %s1778
          %1780 = dma.done %s1776, 128
        $region52: #{tpu_custom_call.1} parent=47 // pred_fallthru
          _
      $region48: #{tpu_custom_call.1} parent=5 // pred_fallthru
        _
    $region6: #{tpu_custom_call.1} parent=1 // loop_footer
      %s20 = sadd.s32 1, %s16
    $region7: #{tpu_custom_call.1} parent=1 // loop_footer_branch
      %15 = sbr.rel target = $region3
    $region8: #{tpu_custom_call.1} parent=1 // loop_exit
      _
    %1781 = vsyncpa [#allocation3], 1
    %s1782 = scalar_lea.sflag [#allocation3], 1
    %1783 = vsyncpa %s1782, 1
    %1784 = vsyncpa [#allocation6], 1
    %1785 = vsyncpa [#allocation4], 1
    %s1786 = scalar_lea.sflag [#allocation4], 1
    %1787 = vsyncpa %s1786, 1

</llo_original>
